<compile_context>
chip_gen: v7x
topology: tpu7x:2x2x1
jax: 0.10.0
libtpu: 0.0.40
codegen_flags: <defaults>
</compile_context>

<pallas_src>
import jax
import jax.numpy as jnp
from jax.experimental import pallas as pl
from jax.experimental.pallas import tpu as pltpu


# ----------------------------------------------------------------------------- kernel
def combined_att_kernel(x1_ref, x2_ref,
                        s1_ref, t1_ref, s2_ref, t2_ref,
                        wq_ref, bq_ref, wkv_ref, bkv_ref,
                        wd1_ref, bd1_ref, wd2_ref, bd2_ref,
                        wd3_ref, bd3_ref, wd4_ref, bd4_ref,
                        o_ref):
    f32 = jnp.float32
    cdt = wq_ref.dtype            # matmul compute dtype (f32 or bf16); accumulation is f32
    d = wq_ref.shape[1]           # intermediate_dim

    # BatchNorm1d (inference): folded to x*scale + shift, done in f32.
    x1n = x1_ref[...].astype(f32) * s1_ref[...] + t1_ref[...]      # (tile_b, F)
    x2n = x2_ref[...].astype(f32) * s2_ref[...] + t2_ref[...]      # (B, F)  (full batch)

    # Q projection for this query tile; K and V fused into one lane-dense (F, 2d) matmul.
    q = jnp.dot(x1n.astype(cdt), wq_ref[...], preferred_element_type=f32) + bq_ref[...]
    kv = jnp.dot(x2n.astype(cdt), wkv_ref[...], preferred_element_type=f32) + bkv_ref[...]
    k = kv[:, :d]
    v = kv[:, d:]

    # Scaled dot-product attention over the batch axis (2-D inputs -> (tile_b, B) scores).
    scores = jax.lax.dot_general(                 # q @ k.T without an explicit transpose
        q.astype(cdt), k.astype(cdt),
        dimension_numbers=(((1,), (1,)), ((), ())),
        preferred_element_type=f32) * (1.0 / d ** 0.5)
    m = jnp.max(scores, axis=-1, keepdims=True)
    e = jnp.exp(scores - m)                       # EUP
    probs = e / jnp.sum(e, axis=-1, keepdims=True)
    ctx = jnp.dot(probs.astype(cdt), v.astype(cdt), preferred_element_type=f32)

    # Both decoders fused: layer 1 column-concat, layers 2..4 block-diagonal weights.
    h = jnp.maximum(jnp.dot(ctx.astype(cdt), wd1_ref[...],
                            preferred_element_type=f32) + bd1_ref[...], 0.0)
    h = jnp.maximum(jnp.dot(h.astype(cdt), wd2_ref[...],
                            preferred_element_type=f32) + bd2_ref[...], 0.0)
    h = jnp.maximum(jnp.dot(h.astype(cdt), wd3_ref[...],
                            preferred_element_type=f32) + bd3_ref[...], 0.0)
    out = jnp.dot(h.astype(cdt), wd4_ref[...],
                  preferred_element_type=f32) + bd4_ref[...]        # (tile_b, 128) lane-dense
    o_ref[...] = out.astype(o_ref.dtype)


# ----------------------------------------------------------------------------- wrapper
def combined_model_att_forward(feat1, feat2, packed, *, tile_b=None):
    """feat1/feat2: (B, feature_dim) backbone features.  Returns (seat_pred, resp_pred)."""
    B, F = feat1.shape
    p = packed
    out_pad = p["wd4"].shape[1]                 # padded to a multiple of 128 lanes
    cdt = p["wq"].dtype
    x1 = feat1.astype(cdt)                      # bf16 halves HBM traffic of the B-scaling array
    x2 = feat2.astype(cdt)

    # Batch tile: biggest tile that comfortably fits VMEM.  Per step we hold (double-buffered)
    # x1/out tiles + the resident x2/(tile_b,B) scores/params -> cap at 512 rows; padded last
    # tile is safe because only the *query* rows are padded (keys/values come from full x2 and
    # out-of-bounds output rows are discarded on store).
    if tile_b is None:
        tile_b = B if B <= 512 else 512
    tile_b = min(tile_b, B)
    if tile_b != B and tile_b % 8 != 0:
        raise ValueError("tile_b must be a multiple of 8 (or the full batch)")
    grid = (pl.cdiv(B, tile_b),)

    args = (x1, x2,
            p["bn1_scale"], p["bn1_shift"], p["bn2_scale"], p["bn2_shift"],
            p["wq"], p["bq"], p["wkv"], p["bkv"],
            p["wd1"], p["bd1"], p["wd2"], p["bd2"],
            p["wd3"], p["bd3"], p["wd4"], p["bd4"])

    def resident(arr):
        # Full-extent 2-D parameter block; index_map ignores the grid index so the tile stays
        # VMEM-resident across all batch steps.  (The lambda does not capture `arr`.)
        return pl.BlockSpec(arr.shape, lambda i: (0, 0))

    in_specs = [
        pl.BlockSpec((tile_b, F), lambda i: (i, 0)),   # x1: tiled over the query batch
        pl.BlockSpec((B, F), lambda i: (0, 0)),        # x2: full batch (K/V need every row)
    ] + [resident(a) for a in args[2:]]

    out = pl.pallas_call(
        combined_att_kernel,
        out_shape=jax.ShapeDtypeStruct((B, out_pad), jnp.float32),
        grid=grid,
        in_specs=in_specs,
        out_specs=pl.BlockSpec((tile_b, out_pad), lambda i: (i, 0)),
        compiler_params=pltpu.CompilerParams(
            dimension_semantics=("parallel",)),        # v7x: shard batch steps over both TCs
    )(*args)

    so, ro = p["seat_out"], p["resp_out"]
    return out[:, :so], out[:, so:so + ro]


# ----------------------------------------------------------------------------- params
def _block_diag(a, b):
    m, n = a.shape
    q, r = b.shape
    top = jnp.concatenate([a, jnp.zeros((m, r), a.dtype)], axis=1)
    bot = jnp.concatenate([jnp.zeros((q, n), b.dtype), b], axis=1)
    return jnp.concatenate([top, bot], axis=0)


def init_params(key, feature_dim, seat_out, resp_out, inter_dim=64):
    """Raw (PyTorch-layout-equivalent) params; weights stored as (in, out)."""
    keys = iter(jax.random.split(key, 32))

    def linear(fin, fout):
        bound = 1.0 / (fin ** 0.5)
        w = jax.random.uniform(next(keys), (fin, fout), jnp.float32, -bound, bound)
        b = jax.random.uniform(next(keys), (1, fout), jnp.float32, -bound, bound)
        return w, b

    def bn(dim):
        gamma = jax.random.uniform(next(keys), (dim,), jnp.float32, 0.5, 1.5)
        beta = 0.1 * jax.random.normal(next(keys), (dim,), jnp.float32)
        mean = 0.1 * jax.random.normal(next(keys), (dim,), jnp.float32)
        var = jax.random.uniform(next(keys), (dim,), jnp.float32, 0.5, 1.5)
        return gamma, beta, mean, var

    p = {}
    p["bn1_gamma"], p["bn1_beta"], p["bn1_mean"], p["bn1_var"] = bn(feature_dim)
    p["bn2_gamma"], p["bn2_beta"], p["bn2_mean"], p["bn2_var"] = bn(feature_dim)
    p["wq"], p["bq"] = linear(feature_dim, inter_dim)
    p["wk"], p["bk"] = linear(feature_dim, inter_dim)
    p["wv"], p["bv"] = linear(feature_dim, inter_dim)
    for prefix, out_dim in (("seat", seat_out), ("resp", resp_out)):
        for idx, (fin, fout) in enumerate(
                [(inter_dim, 64), (64, 32), (32, 16), (16, out_dim)], start=1):
            p[f"{prefix}_w{idx}"], p[f"{prefix}_b{idx}"] = linear(fin, fout)
    return p


def pack_params(p, param_dtype=jnp.float32, eps=1e-5, lane=128):
    """Fold BN, fuse K|V and the two decoders (column-concat / block-diagonal), pad output
    weights to a multiple of 128 lanes so the kernel's single output store is lane-dense."""
    F = p["wq"].shape[0]
    s1 = p["bn1_gamma"] / jnp.sqrt(p["bn1_var"] + eps)
    t1 = p["bn1_beta"] - p["bn1_mean"] * s1
    s2 = p["bn2_gamma"] / jnp.sqrt(p["bn2_var"] + eps)
    t2 = p["bn2_beta"] - p["bn2_mean"] * s2

    wkv = jnp.concatenate([p["wk"], p["wv"]], axis=1)
    bkv = jnp.concatenate([p["bk"], p["bv"]], axis=1)

    wd1 = jnp.concatenate([p["seat_w1"], p["resp_w1"]], axis=1)
    bd1 = jnp.concatenate([p["seat_b1"], p["resp_b1"]], axis=1)
    wd2 = _block_diag(p["seat_w2"], p["resp_w2"])
    bd2 = jnp.concatenate([p["seat_b2"], p["resp_b2"]], axis=1)
    wd3 = _block_diag(p["seat_w3"], p["resp_w3"])
    bd3 = jnp.concatenate([p["seat_b3"], p["resp_b3"]], axis=1)

    so = p["seat_w4"].shape[1]
    ro = p["resp_w4"].shape[1]
    wd4 = _block_diag(p["seat_w4"], p["resp_w4"])
    bd4 = jnp.concatenate([p["seat_b4"], p["resp_b4"]], axis=1)
    out_pad = max(lane, ((so + ro + lane - 1) // lane) * lane)
    wd4 = jnp.pad(wd4, ((0, 0), (0, out_pad - (so + ro))))
    bd4 = jnp.pad(bd4, ((0, 0), (0, out_pad - (so + ro))))

    return dict(
        bn1_scale=s1.reshape(1, F), bn1_shift=t1.reshape(1, F),
        bn2_scale=s2.reshape(1, F), bn2_shift=t2.reshape(1, F),
        wq=p["wq"].astype(param_dtype), bq=p["bq"],
        wkv=wkv.astype(param_dtype), bkv=bkv,
        wd1=wd1.astype(param_dtype), bd1=bd1,
        wd2=wd2.astype(param_dtype), bd2=bd2,
        wd3=wd3.astype(param_dtype), bd3=bd3,
        wd4=wd4.astype(param_dtype), bd4=bd4,
        seat_out=so, resp_out=ro,
    )


# ----------------------------------------------------------------------------- reference
def reference(feat1, feat2, p, eps=1e-5):
    def bnorm(x, pre):
        return ((x - p[pre + "_mean"]) / jnp.sqrt(p[pre + "_var"] + eps)
                * p[pre + "_gamma"] + p[pre + "_beta"])

    x1n = bnorm(feat1, "bn1")
    x2n = bnorm(feat2, "bn2")
    q = x1n @ p["wq"] + p["bq"]
    k = x2n @ p["wk"] + p["bk"]
    v = x2n @ p["wv"] + p["bv"]
    d = p["wq"].shape[1]
    probs = jax.nn.softmax((q @ k.T) / (d ** 0.5), axis=-1)
    ctx = probs @ v

    def mlp(x, pre):
        h = jnp.maximum(x @ p[pre + "_w1"] + p[pre + "_b1"], 0.0)
        h = jnp.maximum(h @ p[pre + "_w2"] + p[pre + "_b2"], 0.0)
        h = jnp.maximum(h @ p[pre + "_w3"] + p[pre + "_b3"], 0.0)
        return h @ p[pre + "_w4"] + p[pre + "_b4"]

    return mlp(ctx, "seat"), mlp(ctx, "resp")


# ----------------------------------------------------------------------------- main
if __name__ == "__main__":
    key = jax.random.PRNGKey(0)
    k_p, k_x1, k_x2 = jax.random.split(key, 3)

    batch, feature_dim = 16, 64
    seat_out, resp_out, inter_dim = 12, 6, 64

    # TODO(synk): resnet_model(x1, shared_mask) and doppler_model(x2) backbones (and the
    # 12x12 shared_mask parameter they consume) are external modules with unspecified
    # architecture; the kernel starts from their (B, feature_dim) feature outputs.
    feat1 = jax.random.normal(k_x1, (batch, feature_dim), jnp.float32)
    feat2 = jax.random.normal(k_x2, (batch, feature_dim), jnp.float32)

    params = init_params(k_p, feature_dim, seat_out, resp_out, inter_dim)
    seat_ref, resp_ref = reference(feat1, feat2, params)

    # f32 path with an explicit batch grid (2 steps of 8 query rows) to exercise the pipeline.
    packed_f32 = pack_params(params, jnp.float32)
    seat, resp = combined_model_att_forward(feat1, feat2, packed_f32, tile_b=8)
    seat, resp = jax.block_until_ready((seat, resp))
    assert seat.shape == (batch, seat_out) and resp.shape == (batch, resp_out)
    assert jnp.allclose(seat, seat_ref, atol=1e-4, rtol=1e-4)
    assert jnp.allclose(resp, resp_ref, atol=1e-4, rtol=1e-4)

    # bf16 weight/activation path (halves feature HBM traffic, f32 accumulation) — loose check.
    packed_bf16 = pack_params(params, jnp.bfloat16)
    seat16, resp16 = combined_model_att_forward(feat1, feat2, packed_bf16)
    seat16, resp16 = jax.block_until_ready((seat16, resp16))
    assert jnp.max(jnp.abs(seat16 - seat_ref)) < 0.1
    assert jnp.max(jnp.abs(resp16 - resp_ref)) < 0.1

    print("KERNEL_OK")
</pallas_src>

<mosaic_0001>
module attributes {stable_mosaic.version = 11 : i64} {
  func.func @combined_att_kernel(%arg0: i32, %arg1: memref<8x64xf32, #tpu.memory_space<vmem>>, %arg2: memref<16x64xf32, #tpu.memory_space<vmem>>, %arg3: memref<1x64xf32, #tpu.memory_space<vmem>>, %arg4: memref<1x64xf32, #tpu.memory_space<vmem>>, %arg5: memref<1x64xf32, #tpu.memory_space<vmem>>, %arg6: memref<1x64xf32, #tpu.memory_space<vmem>>, %arg7: memref<64x64xf32, #tpu.memory_space<vmem>>, %arg8: memref<1x64xf32, #tpu.memory_space<vmem>>, %arg9: memref<64x128xf32, #tpu.memory_space<vmem>>, %arg10: memref<1x128xf32, #tpu.memory_space<vmem>>, %arg11: memref<64x128xf32, #tpu.memory_space<vmem>>, %arg12: memref<1x128xf32, #tpu.memory_space<vmem>>, %arg13: memref<128x64xf32, #tpu.memory_space<vmem>>, %arg14: memref<1x64xf32, #tpu.memory_space<vmem>>, %arg15: memref<64x32xf32, #tpu.memory_space<vmem>>, %arg16: memref<1x32xf32, #tpu.memory_space<vmem>>, %arg17: memref<32x128xf32, #tpu.memory_space<vmem>>, %arg18: memref<1x128xf32, #tpu.memory_space<vmem>>, %arg19: memref<8x128xf32, #tpu.memory_space<vmem>>) attributes {dimension_semantics = [#tpu.dimension_semantics<parallel>], iteration_bounds = array<i64: 2>, scalar_prefetch = 0 : i64, scratch_operands = 0 : i64, tpu.core_type = #tpu.core_type<tc>, window_params = [{transform_indices = @transform_0, window_bounds = array<i64: 8, 64>}, {pipeline_mode = #tpu.pipeline_mode<synchronous>, transform_indices = @transform_1, window_bounds = array<i64: 16, 64>}, {pipeline_mode = #tpu.pipeline_mode<synchronous>, transform_indices = @transform_2, window_bounds = array<i64: 1, 64>}, {pipeline_mode = #tpu.pipeline_mode<synchronous>, transform_indices = @transform_3, window_bounds = array<i64: 1, 64>}, {pipeline_mode = #tpu.pipeline_mode<synchronous>, transform_indices = @transform_4, window_bounds = array<i64: 1, 64>}, {pipeline_mode = #tpu.pipeline_mode<synchronous>, transform_indices = @transform_5, window_bounds = array<i64: 1, 64>}, {pipeline_mode = #tpu.pipeline_mode<synchronous>, transform_indices = @transform_6, window_bounds = array<i64: 64, 64>}, {pipeline_mode = #tpu.pipeline_mode<synchronous>, transform_indices = @transform_7, window_bounds = array<i64: 1, 64>}, {pipeline_mode = #tpu.pipeline_mode<synchronous>, transform_indices = @transform_8, window_bounds = array<i64: 64, 128>}, {pipeline_mode = #tpu.pipeline_mode<synchronous>, transform_indices = @transform_9, window_bounds = array<i64: 1, 128>}, {pipeline_mode = #tpu.pipeline_mode<synchronous>, transform_indices = @transform_10, window_bounds = array<i64: 64, 128>}, {pipeline_mode = #tpu.pipeline_mode<synchronous>, transform_indices = @transform_11, window_bounds = array<i64: 1, 128>}, {pipeline_mode = #tpu.pipeline_mode<synchronous>, transform_indices = @transform_12, window_bounds = array<i64: 128, 64>}, {pipeline_mode = #tpu.pipeline_mode<synchronous>, transform_indices = @transform_13, window_bounds = array<i64: 1, 64>}, {pipeline_mode = #tpu.pipeline_mode<synchronous>, transform_indices = @transform_14, window_bounds = array<i64: 64, 32>}, {pipeline_mode = #tpu.pipeline_mode<synchronous>, transform_indices = @transform_15, window_bounds = array<i64: 1, 32>}, {pipeline_mode = #tpu.pipeline_mode<synchronous>, transform_indices = @transform_16, window_bounds = array<i64: 32, 128>}, {pipeline_mode = #tpu.pipeline_mode<synchronous>, transform_indices = @transform_17, window_bounds = array<i64: 1, 128>}, {transform_indices = @transform_18, window_bounds = array<i64: 8, 128>}]} {
    %c0 = arith.constant 0 : index
    %c0_0 = arith.constant 0 : index
    %0 = vector.load %arg1[%c0, %c0_0] : memref<8x64xf32, #tpu.memory_space<vmem>>, vector<8x64xf32>
    %c0_1 = arith.constant 0 : index
    %c0_2 = arith.constant 0 : index
    %1 = vector.load %arg3[%c0_1, %c0_2] : memref<1x64xf32, #tpu.memory_space<vmem>>, vector<1x64xf32>
    %2 = vector.broadcast %1 : vector<1x64xf32> to vector<8x64xf32>
    %3 = arith.mulf %0, %2 : vector<8x64xf32>
    %c0_3 = arith.constant 0 : index
    %c0_4 = arith.constant 0 : index
    %4 = vector.load %arg4[%c0_3, %c0_4] : memref<1x64xf32, #tpu.memory_space<vmem>>, vector<1x64xf32>
    %5 = vector.broadcast %4 : vector<1x64xf32> to vector<8x64xf32>
    %6 = arith.addf %3, %5 : vector<8x64xf32>
    %c0_5 = arith.constant 0 : index
    %c0_6 = arith.constant 0 : index
    %7 = vector.load %arg2[%c0_5, %c0_6] : memref<16x64xf32, #tpu.memory_space<vmem>>, vector<16x64xf32>
    %c0_7 = arith.constant 0 : index
    %c0_8 = arith.constant 0 : index
    %8 = vector.load %arg5[%c0_7, %c0_8] : memref<1x64xf32, #tpu.memory_space<vmem>>, vector<1x64xf32>
    %9 = vector.broadcast %8 : vector<1x64xf32> to vector<16x64xf32>
    %10 = arith.mulf %7, %9 : vector<16x64xf32>
    %c0_9 = arith.constant 0 : index
    %c0_10 = arith.constant 0 : index
    %11 = vector.load %arg6[%c0_9, %c0_10] : memref<1x64xf32, #tpu.memory_space<vmem>>, vector<1x64xf32>
    %12 = vector.broadcast %11 : vector<1x64xf32> to vector<16x64xf32>
    %13 = arith.addf %10, %12 : vector<16x64xf32>
    %c0_11 = arith.constant 0 : index
    %c0_12 = arith.constant 0 : index
    %14 = vector.load %arg7[%c0_11, %c0_12] : memref<64x64xf32, #tpu.memory_space<vmem>>, vector<64x64xf32>
    %cst = arith.constant dense<0.000000e+00> : vector<8x64xf32>
    %15 = tpu.matmul %6, %14, %cst {dimension_numbers = #tpu.dot_dimension_numbers<[1], [0], [0], [1], [0, 0, 1, 1], [], []>} : vector<8x64xf32>, vector<64x64xf32>, vector<8x64xf32> -> vector<8x64xf32>
    %c0_13 = arith.constant 0 : index
    %c0_14 = arith.constant 0 : index
    %16 = vector.load %arg8[%c0_13, %c0_14] : memref<1x64xf32, #tpu.memory_space<vmem>>, vector<1x64xf32>
    %17 = vector.broadcast %16 : vector<1x64xf32> to vector<8x64xf32>
    %18 = arith.addf %15, %17 : vector<8x64xf32>
    %c0_15 = arith.constant 0 : index
    %c0_16 = arith.constant 0 : index
    %19 = vector.load %arg9[%c0_15, %c0_16] : memref<64x128xf32, #tpu.memory_space<vmem>>, vector<64x128xf32>
    %cst_17 = arith.constant dense<0.000000e+00> : vector<16x128xf32>
    %20 = tpu.matmul %13, %19, %cst_17 {dimension_numbers = #tpu.dot_dimension_numbers<[1], [0], [0], [1], [0, 0, 1, 1], [], []>} : vector<16x64xf32>, vector<64x128xf32>, vector<16x128xf32> -> vector<16x128xf32>
    %c0_18 = arith.constant 0 : index
    %c0_19 = arith.constant 0 : index
    %21 = vector.load %arg10[%c0_18, %c0_19] : memref<1x128xf32, #tpu.memory_space<vmem>>, vector<1x128xf32>
    %22 = vector.broadcast %21 : vector<1x128xf32> to vector<16x128xf32>
    %23 = arith.addf %20, %22 : vector<16x128xf32>
    %24 = vector.extract_strided_slice %23 {offsets = [0, 0], sizes = [16, 64], strides = [1, 1]} : vector<16x128xf32> to vector<16x64xf32>
    %25 = vector.extract_strided_slice %23 {offsets = [0, 64], sizes = [16, 64], strides = [1, 1]} : vector<16x128xf32> to vector<16x64xf32>
    %cst_20 = arith.constant dense<0.000000e+00> : vector<8x16xf32>
    %26 = tpu.matmul %18, %24, %cst_20 {dimension_numbers = #tpu.dot_dimension_numbers<[1], [1], [0], [0], [0, 0, 1, 0], [], []>} : vector<8x64xf32>, vector<16x64xf32>, vector<8x16xf32> -> vector<8x16xf32>
    %cst_21 = arith.constant 1.250000e-01 : f32
    %27 = vector.broadcast %cst_21 : f32 to vector<8x16xf32>
    %28 = arith.mulf %26, %27 : vector<8x16xf32>
    %cst_22 = arith.constant dense<0xFF800000> : vector<8xf32>
    %29 = vector.multi_reduction <maximumf>, %28, %cst_22 [1] : vector<8x16xf32> to vector<8xf32>
    %30 = vector.shape_cast %29 : vector<8xf32> to vector<8x1xf32>
    %31 = vector.broadcast %30 : vector<8x1xf32> to vector<8x16xf32>
    %32 = arith.subf %28, %31 : vector<8x16xf32>
    %33 = math.exp %32 : vector<8x16xf32>
    %cst_23 = arith.constant dense<0.000000e+00> : vector<8xf32>
    %34 = vector.multi_reduction <add>, %33, %cst_23 [1] : vector<8x16xf32> to vector<8xf32>
    %35 = vector.shape_cast %34 : vector<8xf32> to vector<8x1xf32>
    %36 = vector.broadcast %35 : vector<8x1xf32> to vector<8x16xf32>
    %37 = arith.divf %33, %36 : vector<8x16xf32>
    %cst_24 = arith.constant dense<0.000000e+00> : vector<8x64xf32>
    %38 = tpu.matmul %37, %25, %cst_24 {dimension_numbers = #tpu.dot_dimension_numbers<[1], [0], [0], [1], [0, 0, 1, 1], [], []>} : vector<8x16xf32>, vector<16x64xf32>, vector<8x64xf32> -> vector<8x64xf32>
    %c0_25 = arith.constant 0 : index
    %c0_26 = arith.constant 0 : index
    %39 = vector.load %arg11[%c0_25, %c0_26] : memref<64x128xf32, #tpu.memory_space<vmem>>, vector<64x128xf32>
    %cst_27 = arith.constant dense<0.000000e+00> : vector<8x128xf32>
    %40 = tpu.matmul %38, %39, %cst_27 {dimension_numbers = #tpu.dot_dimension_numbers<[1], [0], [0], [1], [0, 0, 1, 1], [], []>} : vector<8x64xf32>, vector<64x128xf32>, vector<8x128xf32> -> vector<8x128xf32>
    %c0_28 = arith.constant 0 : index
    %c0_29 = arith.constant 0 : index
    %41 = vector.load %arg12[%c0_28, %c0_29] : memref<1x128xf32, #tpu.memory_space<vmem>>, vector<1x128xf32>
    %42 = vector.broadcast %41 : vector<1x128xf32> to vector<8x128xf32>
    %43 = arith.addf %40, %42 : vector<8x128xf32>
    %cst_30 = arith.constant 0.000000e+00 : f32
    %44 = vector.broadcast %cst_30 : f32 to vector<8x128xf32>
    %45 = arith.maximumf %43, %44 : vector<8x128xf32>
    %c0_31 = arith.constant 0 : index
    %c0_32 = arith.constant 0 : index
    %46 = vector.load %arg13[%c0_31, %c0_32] : memref<128x64xf32, #tpu.memory_space<vmem>>, vector<128x64xf32>
    %cst_33 = arith.constant dense<0.000000e+00> : vector<8x64xf32>
    %47 = tpu.matmul %45, %46, %cst_33 {dimension_numbers = #tpu.dot_dimension_numbers<[1], [0], [0], [1], [0, 0, 1, 1], [], []>} : vector<8x128xf32>, vector<128x64xf32>, vector<8x64xf32> -> vector<8x64xf32>
    %c0_34 = arith.constant 0 : index
    %c0_35 = arith.constant 0 : index
    %48 = vector.load %arg14[%c0_34, %c0_35] : memref<1x64xf32, #tpu.memory_space<vmem>>, vector<1x64xf32>
    %49 = vector.broadcast %48 : vector<1x64xf32> to vector<8x64xf32>
    %50 = arith.addf %47, %49 : vector<8x64xf32>
    %cst_36 = arith.constant 0.000000e+00 : f32
    %51 = vector.broadcast %cst_36 : f32 to vector<8x64xf32>
    %52 = arith.maximumf %50, %51 : vector<8x64xf32>
    %c0_37 = arith.constant 0 : index
    %c0_38 = arith.constant 0 : index
    %53 = vector.load %arg15[%c0_37, %c0_38] : memref<64x32xf32, #tpu.memory_space<vmem>>, vector<64x32xf32>
    %cst_39 = arith.constant dense<0.000000e+00> : vector<8x32xf32>
    %54 = tpu.matmul %52, %53, %cst_39 {dimension_numbers = #tpu.dot_dimension_numbers<[1], [0], [0], [1], [0, 0, 1, 1], [], []>} : vector<8x64xf32>, vector<64x32xf32>, vector<8x32xf32> -> vector<8x32xf32>
    %c0_40 = arith.constant 0 : index
    %c0_41 = arith.constant 0 : index
    %55 = vector.load %arg16[%c0_40, %c0_41] : memref<1x32xf32, #tpu.memory_space<vmem>>, vector<1x32xf32>
    %56 = vector.broadcast %55 : vector<1x32xf32> to vector<8x32xf32>
    %57 = arith.addf %54, %56 : vector<8x32xf32>
    %cst_42 = arith.constant 0.000000e+00 : f32
    %58 = vector.broadcast %cst_42 : f32 to vector<8x32xf32>
    %59 = arith.maximumf %57, %58 : vector<8x32xf32>
    %c0_43 = arith.constant 0 : index
    %c0_44 = arith.constant 0 : index
    %60 = vector.load %arg17[%c0_43, %c0_44] : memref<32x128xf32, #tpu.memory_space<vmem>>, vector<32x128xf32>
    %cst_45 = arith.constant dense<0.000000e+00> : vector<8x128xf32>
    %61 = tpu.matmul %59, %60, %cst_45 {dimension_numbers = #tpu.dot_dimension_numbers<[1], [0], [0], [1], [0, 0, 1, 1], [], []>} : vector<8x32xf32>, vector<32x128xf32>, vector<8x128xf32> -> vector<8x128xf32>
    %c0_46 = arith.constant 0 : index
    %c0_47 = arith.constant 0 : index
    %62 = vector.load %arg18[%c0_46, %c0_47] : memref<1x128xf32, #tpu.memory_space<vmem>>, vector<1x128xf32>
    %63 = vector.broadcast %62 : vector<1x128xf32> to vector<8x128xf32>
    %64 = arith.addf %61, %63 : vector<8x128xf32>
    %c0_48 = arith.constant 0 : index
    %c0_49 = arith.constant 0 : index
    %65 = vector.load %arg19[%c0_48, %c0_49] : memref<8x128xf32, #tpu.memory_space<vmem>>, vector<8x128xf32>
    tpu.vector_store %arg19[%c0_48, %c0_49], %64 {strides = array<i32>} : memref<8x128xf32, #tpu.memory_space<vmem>>, vector<8x128xf32>,
    return
  }
  func.func @transform_0(%arg0: i32) -> (i32, i32) {
    %c0_i32 = arith.constant 0 : i32
    %c0_i32_0 = arith.constant 0 : i32
    return %arg0, %c0_i32 : i32, i32
  }
  func.func @transform_1(%arg0: i32) -> (i32, i32) {
    %c0_i32 = arith.constant 0 : i32
    %c0_i32_0 = arith.constant 0 : i32
    %c0_i32_1 = arith.constant 0 : i32
    return %c0_i32, %c0_i32_0 : i32, i32
  }
  func.func @transform_2(%arg0: i32) -> (i32, i32) {
    %c0_i32 = arith.constant 0 : i32
    %c0_i32_0 = arith.constant 0 : i32
    %c0_i32_1 = arith.constant 0 : i32
    return %c0_i32, %c0_i32_0 : i32, i32
  }
  func.func @transform_3(%arg0: i32) -> (i32, i32) {
    %c0_i32 = arith.constant 0 : i32
    %c0_i32_0 = arith.constant 0 : i32
    %c0_i32_1 = arith.constant 0 : i32
    return %c0_i32, %c0_i32_0 : i32, i32
  }
  func.func @transform_4(%arg0: i32) -> (i32, i32) {
    %c0_i32 = arith.constant 0 : i32
    %c0_i32_0 = arith.constant 0 : i32
    %c0_i32_1 = arith.constant 0 : i32
    return %c0_i32, %c0_i32_0 : i32, i32
  }
  func.func @transform_5(%arg0: i32) -> (i32, i32) {
    %c0_i32 = arith.constant 0 : i32
    %c0_i32_0 = arith.constant 0 : i32
    %c0_i32_1 = arith.constant 0 : i32
    return %c0_i32, %c0_i32_0 : i32, i32
  }
  func.func @transform_6(%arg0: i32) -> (i32, i32) {
    %c0_i32 = arith.constant 0 : i32
    %c0_i32_0 = arith.constant 0 : i32
    %c0_i32_1 = arith.constant 0 : i32
    return %c0_i32, %c0_i32_0 : i32, i32
  }
  func.func @transform_7(%arg0: i32) -> (i32, i32) {
    %c0_i32 = arith.constant 0 : i32
    %c0_i32_0 = arith.constant 0 : i32
    %c0_i32_1 = arith.constant 0 : i32
    return %c0_i32, %c0_i32_0 : i32, i32
  }
  func.func @transform_8(%arg0: i32) -> (i32, i32) {
    %c0_i32 = arith.constant 0 : i32
    %c0_i32_0 = arith.constant 0 : i32
    %c0_i32_1 = arith.constant 0 : i32
    return %c0_i32, %c0_i32_0 : i32, i32
  }
  func.func @transform_9(%arg0: i32) -> (i32, i32) {
    %c0_i32 = arith.constant 0 : i32
    %c0_i32_0 = arith.constant 0 : i32
    %c0_i32_1 = arith.constant 0 : i32
    return %c0_i32, %c0_i32_0 : i32, i32
  }
  func.func @transform_10(%arg0: i32) -> (i32, i32) {
    %c0_i32 = arith.constant 0 : i32
    %c0_i32_0 = arith.constant 0 : i32
    %c0_i32_1 = arith.constant 0 : i32
    return %c0_i32, %c0_i32_0 : i32, i32
  }
  func.func @transform_11(%arg0: i32) -> (i32, i32) {
    %c0_i32 = arith.constant 0 : i32
    %c0_i32_0 = arith.constant 0 : i32
    %c0_i32_1 = arith.constant 0 : i32
    return %c0_i32, %c0_i32_0 : i32, i32
  }
  func.func @transform_12(%arg0: i32) -> (i32, i32) {
    %c0_i32 = arith.constant 0 : i32
    %c0_i32_0 = arith.constant 0 : i32
    %c0_i32_1 = arith.constant 0 : i32
    return %c0_i32, %c0_i32_0 : i32, i32
  }
  func.func @transform_13(%arg0: i32) -> (i32, i32) {
    %c0_i32 = arith.constant 0 : i32
    %c0_i32_0 = arith.constant 0 : i32
    %c0_i32_1 = arith.constant 0 : i32
    return %c0_i32, %c0_i32_0 : i32, i32
  }
  func.func @transform_14(%arg0: i32) -> (i32, i32) {
    %c0_i32 = arith.constant 0 : i32
    %c0_i32_0 = arith.constant 0 : i32
    %c0_i32_1 = arith.constant 0 : i32
    return %c0_i32, %c0_i32_0 : i32, i32
  }
  func.func @transform_15(%arg0: i32) -> (i32, i32) {
    %c0_i32 = arith.constant 0 : i32
    %c0_i32_0 = arith.constant 0 : i32
    %c0_i32_1 = arith.constant 0 : i32
    return %c0_i32, %c0_i32_0 : i32, i32
  }
  func.func @transform_16(%arg0: i32) -> (i32, i32) {
    %c0_i32 = arith.constant 0 : i32
    %c0_i32_0 = arith.constant 0 : i32
    %c0_i32_1 = arith.constant 0 : i32
    return %c0_i32, %c0_i32_0 : i32, i32
  }
  func.func @transform_17(%arg0: i32) -> (i32, i32) {
    %c0_i32 = arith.constant 0 : i32
    %c0_i32_0 = arith.constant 0 : i32
    %c0_i32_1 = arith.constant 0 : i32
    return %c0_i32, %c0_i32_0 : i32, i32
  }
  func.func @transform_18(%arg0: i32) -> (i32, i32) {
    %c0_i32 = arith.constant 0 : i32
    %c0_i32_0 = arith.constant 0 : i32
    return %arg0, %c0_i32 : i32, i32
  }
}

</mosaic_0001>

<llo_original>
// kernel: tpu_custom_call.1
$region0: #{tpu_custom_call.1}
  #allocation0 [shape = 'u32[]', space=smem, size = 0x4, offset = 0x4, fixed_abs, tag = 'smem constant byte address 0x4 - core index']
  #allocation1 [shape = 'u32[144,128]{1,0:T(1,128)}', space=vmem, size = 0x12000, scoped, tag = 'internal scratch']
  %s0 = inlined_call_operand.vmem [shape: f32[16,64], index: 0, kind: input, shape index: {}]
  %s1 = inlined_call_operand.hbm [shape: f32[16,64], index: 1, kind: input, shape index: {}]
  %s2 = inlined_call_operand.vmem [shape: f32[1,64], index: 2, kind: input, shape index: {}]
  %s3 = inlined_call_operand.vmem [shape: f32[1,64], index: 3, kind: input, shape index: {}]
  %s4 = inlined_call_operand.vmem [shape: f32[1,64], index: 4, kind: input, shape index: {}]
  %s5 = inlined_call_operand.vmem [shape: f32[1,64], index: 5, kind: input, shape index: {}]
  %s6 = inlined_call_operand.vmem [shape: f32[64,64], index: 6, kind: input, shape index: {}]
  %s7 = inlined_call_operand.vmem [shape: f32[1,64], index: 7, kind: input, shape index: {}]
  %s8 = inlined_call_operand.vmem [shape: f32[64,128], index: 8, kind: input, shape index: {}]
  %s9 = inlined_call_operand.hbm [shape: f32[1,128], index: 9, kind: input, shape index: {}]
  %s10 = inlined_call_operand.vmem [shape: f32[64,128], index: 10, kind: input, shape index: {}]
  %s11 = inlined_call_operand.hbm [shape: f32[1,128], index: 11, kind: input, shape index: {}]
  %s12 = inlined_call_operand.vmem [shape: f32[128,64], index: 12, kind: input, shape index: {}]
  %s13 = inlined_call_operand.hbm [shape: f32[1,64], index: 13, kind: input, shape index: {}]
  %s14 = inlined_call_operand.vmem [shape: f32[64,32], index: 14, kind: input, shape index: {}]
  %s15 = inlined_call_operand.vmem [shape: f32[1,32], index: 15, kind: input, shape index: {}]
  %s16 = inlined_call_operand.vmem [shape: f32[32,128], index: 16, kind: input, shape index: {}]
  %s17 = inlined_call_operand.vmem [shape: f32[1,128], index: 17, kind: input, shape index: {}]
  %s18 = inlined_call_operand.hbm [shape: f32[16,128], index: 18, kind: output, shape index: {}]
  %s19 = sld [smem:[#allocation0]]
  $region121: #{tpu_custom_call.1} parent=0
    _
  %s21 = ssub.s32 1, %s19
  %s22 = scalar_select 0, %s21, %s19
  $region1: #{tpu_custom_call.1} parent=0
    #allocation2 [shape = 'u8[8192]{0}', space=vmem, size = 0x2000, scoped, tag = 'input window, operand 1, single buffered']
    #allocation3 [shape = 's32[2]{0}', space=sflag, size = 0x8, scoped, tag = 'scoped memory for tpu_custom_call.1']
    #allocation4 [shape = 's32[2]{0}', space=sflag, size = 0x8, scoped, tag = 'scoped memory for tpu_custom_call.1']
    #allocation5 [shape = 'u8[512]{0}', space=vmem, size = 0x400, scoped, tag = 'input window, operand 9, single buffered']
    #allocation6 [shape = 's32[1]{0}', space=sflag, size = 0x4, scoped, tag = 'scoped memory for tpu_custom_call.1']
    #allocation7 [shape = 'u8[512]{0}', space=vmem, size = 0x400, scoped, tag = 'input window, operand 11, single buffered']
    #allocation8 [shape = 'u8[512]{0}', space=vmem, size = 0x400, scoped, tag = 'input window, operand 13, single buffered']
    #allocation9 [shape = 's32[1]{0}', space=sflag, size = 0x4, scoped, tag = 'scoped memory for tpu_custom_call.1']
    #allocation10 [shape = 'u8[8192]{0}', space=vmem, size = 0x2000, scoped, tag = 'output window, operand 0']
    %23 = vsyncpa [#allocation3], 0
    %24 = vsyncpa [#allocation6], 0
    %25 = vsyncpa [#allocation9], 0
    %26 = vsyncpa [#allocation4], 0
    %s27 = scalar_lea.sflag [#allocation4], 1
    %28 = vsyncpa %s27, 0
    loop: start=0, step=1, limit=4
    $region2: #{tpu_custom_call.1} parent=1 // loop_pre_header
      _
    $region3: #{tpu_custom_call.1} parent=1 // loop_header
      %s30 = sphi 0, %s34
      %p31 = scmp.ge.s32.totalorder %s30, 4
      %s40 = sphi 0, %s42
      %s43 = sphi 0, %s40
      %s44 = sphi 0, %s43
      %s60 = sphi 0, %s44
      %s64 = sphi 0, %s64
      %s66 = sphi 0, %s64
      %s67 = sphi 0, %s66
      %s81 = sphi 0, %s67
      %s85 = sphi 0, %s85
      %s87 = sphi 0, %s85
      %s88 = sphi 0, %s87
      %s102 = sphi 0, %s88
      %s106 = sphi 0, %s106
      %s108 = sphi 0, %s106
      %s109 = sphi 0, %s108
      %s123 = sphi 0, %s109
      %s127 = sphi 0, %s127
      %s129 = sphi 0, %s127
      %s130 = sphi 0, %s129
      %s144 = sphi 0, %s130
      %s148 = sphi 0, %s148
      %s150 = sphi 0, %s148
      %s151 = sphi 0, %s150
      %s165 = sphi 0, %s151
      %s169 = sphi 0, %s169
      %s171 = sphi 0, %s169
      %s172 = sphi 0, %s171
      %s186 = sphi 0, %s172
      %s190 = sphi 0, %s190
      %s192 = sphi 0, %s190
      %s193 = sphi 0, %s192
      %s207 = sphi 0, %s193
      %s211 = sphi 0, %s211
      %s213 = sphi 0, %s211
      %s214 = sphi 0, %s213
      %s228 = sphi 0, %s214
      %s232 = sphi 0, %s232
      %s234 = sphi 0, %s232
      %s235 = sphi 0, %s234
      %s249 = sphi 0, %s235
      %s253 = sphi 0, %s253
      %s255 = sphi 0, %s253
      %s256 = sphi 0, %s255
      %s270 = sphi 0, %s256
      %s274 = sphi 0, %s274
      %s276 = sphi 0, %s274
      %s277 = sphi 0, %s276
      %s291 = sphi 0, %s277
      %s295 = sphi 0, %s295
      %s297 = sphi 0, %s295
      %s298 = sphi 0, %s297
      %s312 = sphi 0, %s298
      %s316 = sphi 0, %s316
      %s318 = sphi 0, %s316
      %s319 = sphi 0, %s318
      %s333 = sphi 0, %s319
      %s337 = sphi 0, %s337
      %s339 = sphi 0, %s337
      %s340 = sphi 0, %s339
      %s354 = sphi 0, %s340
      %s358 = sphi 0, %s358
      %s360 = sphi 0, %s358
      %s361 = sphi 0, %s360
      %s375 = sphi 0, %s361
      %s379 = sphi 0, %s379
      %s381 = sphi 0, %s379
      %s382 = sphi 0, %s381
      %s396 = sphi 0, %s382
      %s400 = sphi 0, %s400
      %s402 = sphi 0, %s400
      %s403 = sphi 0, %s402
      %s417 = sphi 0, %s403
      %s423 = sphi 0, %s425
      %s426 = sphi 0, %s423
      %s427 = sphi 0, %s426
      %s443 = sphi 0, %s427
    $region4: #{tpu_custom_call.1} parent=1 // loop_header_branch
      %33 = sbr.rel (%p31) target = $region8
    $region5: #{tpu_custom_call.1} parent=1 // loop_body
      %s35 = ssub.s32 %s30, 1
      %s36 = ssub.s32 %s30, 2
      %s37 = sadd.s32 %s30, 1
      %s38 = ssub.s32 %s30, %s37
      %p39 = scmp.eq.s32.totalorder %s38, 0
      %s41 = sadd.s32 %s40, 1
      %s42 = scalar_select %p39, %s40, %s41
      %p45 = pneg %p39
      %p46 = scmp.eq.s32.totalorder %s30, 1
      %p47 = por %p45, %p46
      %p48 = scmp.ne.s32.totalorder %s40, %s43
      %p49 = scmp.eq.s32.totalorder %s30, 0
      %p50 = por %p48, %p49
      %p51 = scmp.ne.s32.totalorder %s40, %s43
      %p52 = scmp.eq.s32.totalorder %s35, 1
      %p53 = por %p51, %p52
      %p54 = scmp.ne.s32.totalorder %s43, %s44
      %p55 = scmp.eq.s32.totalorder %s35, 0
      %p56 = por %p54, %p55
      %p57 = scmp.ne.s32.totalorder %s43, %s44
      %p58 = scmp.eq.s32.totalorder %s36, 1
      %p59 = por %p57, %p58
      %p61 = scmp.ne.s32.totalorder %s44, %s60
      %p62 = scmp.eq.s32.totalorder %s36, 0
      %p63 = por %p61, %p62
      %s65 = sadd.s32 %s64, 1
      %p68 = scmp.eq.s32.totalorder %s30, 1
      %p69 = scmp.ne.s32.totalorder %s64, %s66
      %p70 = scmp.eq.s32.totalorder %s30, 0
      %p71 = por %p69, %p70
      %p72 = scmp.ne.s32.totalorder %s64, %s66
      %p73 = scmp.eq.s32.totalorder %s35, 1
      %p74 = por %p72, %p73
      %p75 = scmp.ne.s32.totalorder %s66, %s67
      %p76 = scmp.eq.s32.totalorder %s35, 0
      %p77 = por %p75, %p76
      %p78 = scmp.ne.s32.totalorder %s66, %s67
      %p79 = scmp.eq.s32.totalorder %s36, 1
      %p80 = por %p78, %p79
      %p82 = scmp.ne.s32.totalorder %s67, %s81
      %p83 = scmp.eq.s32.totalorder %s36, 0
      %p84 = por %p82, %p83
      %s86 = sadd.s32 %s85, 1
      %p89 = scmp.eq.s32.totalorder %s30, 1
      %p90 = scmp.ne.s32.totalorder %s85, %s87
      %p91 = scmp.eq.s32.totalorder %s30, 0
      %p92 = por %p90, %p91
      %p93 = scmp.ne.s32.totalorder %s85, %s87
      %p94 = scmp.eq.s32.totalorder %s35, 1
      %p95 = por %p93, %p94
      %p96 = scmp.ne.s32.totalorder %s87, %s88
      %p97 = scmp.eq.s32.totalorder %s35, 0
      %p98 = por %p96, %p97
      %p99 = scmp.ne.s32.totalorder %s87, %s88
      %p100 = scmp.eq.s32.totalorder %s36, 1
      %p101 = por %p99, %p100
      %p103 = scmp.ne.s32.totalorder %s88, %s102
      %p104 = scmp.eq.s32.totalorder %s36, 0
      %p105 = por %p103, %p104
      %s107 = sadd.s32 %s106, 1
      %p110 = scmp.eq.s32.totalorder %s30, 1
      %p111 = scmp.ne.s32.totalorder %s106, %s108
      %p112 = scmp.eq.s32.totalorder %s30, 0
      %p113 = por %p111, %p112
      %p114 = scmp.ne.s32.totalorder %s106, %s108
      %p115 = scmp.eq.s32.totalorder %s35, 1
      %p116 = por %p114, %p115
      %p117 = scmp.ne.s32.totalorder %s108, %s109
      %p118 = scmp.eq.s32.totalorder %s35, 0
      %p119 = por %p117, %p118
      %p120 = scmp.ne.s32.totalorder %s108, %s109
      %p121 = scmp.eq.s32.totalorder %s36, 1
      %p122 = por %p120, %p121
      %p124 = scmp.ne.s32.totalorder %s109, %s123
      %p125 = scmp.eq.s32.totalorder %s36, 0
      %p126 = por %p124, %p125
      %s128 = sadd.s32 %s127, 1
      %p131 = scmp.eq.s32.totalorder %s30, 1
      %p132 = scmp.ne.s32.totalorder %s127, %s129
      %p133 = scmp.eq.s32.totalorder %s30, 0
      %p134 = por %p132, %p133
      %p135 = scmp.ne.s32.totalorder %s127, %s129
      %p136 = scmp.eq.s32.totalorder %s35, 1
      %p137 = por %p135, %p136
      %p138 = scmp.ne.s32.totalorder %s129, %s130
      %p139 = scmp.eq.s32.totalorder %s35, 0
      %p140 = por %p138, %p139
      %p141 = scmp.ne.s32.totalorder %s129, %s130
      %p142 = scmp.eq.s32.totalorder %s36, 1
      %p143 = por %p141, %p142
      %p145 = scmp.ne.s32.totalorder %s130, %s144
      %p146 = scmp.eq.s32.totalorder %s36, 0
      %p147 = por %p145, %p146
      %s149 = sadd.s32 %s148, 1
      %p152 = scmp.eq.s32.totalorder %s30, 1
      %p153 = scmp.ne.s32.totalorder %s148, %s150
      %p154 = scmp.eq.s32.totalorder %s30, 0
      %p155 = por %p153, %p154
      %p156 = scmp.ne.s32.totalorder %s148, %s150
      %p157 = scmp.eq.s32.totalorder %s35, 1
      %p158 = por %p156, %p157
      %p159 = scmp.ne.s32.totalorder %s150, %s151
      %p160 = scmp.eq.s32.totalorder %s35, 0
      %p161 = por %p159, %p160
      %p162 = scmp.ne.s32.totalorder %s150, %s151
      %p163 = scmp.eq.s32.totalorder %s36, 1
      %p164 = por %p162, %p163
      %p166 = scmp.ne.s32.totalorder %s151, %s165
      %p167 = scmp.eq.s32.totalorder %s36, 0
      %p168 = por %p166, %p167
      %s170 = sadd.s32 %s169, 1
      %p173 = scmp.eq.s32.totalorder %s30, 1
      %p174 = scmp.ne.s32.totalorder %s169, %s171
      %p175 = scmp.eq.s32.totalorder %s30, 0
      %p176 = por %p174, %p175
      %p177 = scmp.ne.s32.totalorder %s169, %s171
      %p178 = scmp.eq.s32.totalorder %s35, 1
      %p179 = por %p177, %p178
      %p180 = scmp.ne.s32.totalorder %s171, %s172
      %p181 = scmp.eq.s32.totalorder %s35, 0
      %p182 = por %p180, %p181
      %p183 = scmp.ne.s32.totalorder %s171, %s172
      %p184 = scmp.eq.s32.totalorder %s36, 1
      %p185 = por %p183, %p184
      %p187 = scmp.ne.s32.totalorder %s172, %s186
      %p188 = scmp.eq.s32.totalorder %s36, 0
      %p189 = por %p187, %p188
      %s191 = sadd.s32 %s190, 1
      %p194 = scmp.eq.s32.totalorder %s30, 1
      %p195 = scmp.ne.s32.totalorder %s190, %s192
      %p196 = scmp.eq.s32.totalorder %s30, 0
      %p197 = por %p195, %p196
      %p198 = scmp.ne.s32.totalorder %s190, %s192
      %p199 = scmp.eq.s32.totalorder %s35, 1
      %p200 = por %p198, %p199
      %p201 = scmp.ne.s32.totalorder %s192, %s193
      %p202 = scmp.eq.s32.totalorder %s35, 0
      %p203 = por %p201, %p202
      %p204 = scmp.ne.s32.totalorder %s192, %s193
      %p205 = scmp.eq.s32.totalorder %s36, 1
      %p206 = por %p204, %p205
      %p208 = scmp.ne.s32.totalorder %s193, %s207
      %p209 = scmp.eq.s32.totalorder %s36, 0
      %p210 = por %p208, %p209
      %s212 = sadd.s32 %s211, 1
      %p215 = scmp.eq.s32.totalorder %s30, 1
      %p216 = scmp.ne.s32.totalorder %s211, %s213
      %p217 = scmp.eq.s32.totalorder %s30, 0
      %p218 = por %p216, %p217
      %p219 = scmp.ne.s32.totalorder %s211, %s213
      %p220 = scmp.eq.s32.totalorder %s35, 1
      %p221 = por %p219, %p220
      %p222 = scmp.ne.s32.totalorder %s213, %s214
      %p223 = scmp.eq.s32.totalorder %s35, 0
      %p224 = por %p222, %p223
      %p225 = scmp.ne.s32.totalorder %s213, %s214
      %p226 = scmp.eq.s32.totalorder %s36, 1
      %p227 = por %p225, %p226
      %p229 = scmp.ne.s32.totalorder %s214, %s228
      %p230 = scmp.eq.s32.totalorder %s36, 0
      %p231 = por %p229, %p230
      %s233 = sadd.s32 %s232, 1
      %p236 = scmp.eq.s32.totalorder %s30, 1
      %p237 = scmp.ne.s32.totalorder %s232, %s234
      %p238 = scmp.eq.s32.totalorder %s30, 0
      %p239 = por %p237, %p238
      %p240 = scmp.ne.s32.totalorder %s232, %s234
      %p241 = scmp.eq.s32.totalorder %s35, 1
      %p242 = por %p240, %p241
      %p243 = scmp.ne.s32.totalorder %s234, %s235
      %p244 = scmp.eq.s32.totalorder %s35, 0
      %p245 = por %p243, %p244
      %p246 = scmp.ne.s32.totalorder %s234, %s235
      %p247 = scmp.eq.s32.totalorder %s36, 1
      %p248 = por %p246, %p247
      %p250 = scmp.ne.s32.totalorder %s235, %s249
      %p251 = scmp.eq.s32.totalorder %s36, 0
      %p252 = por %p250, %p251
      %s254 = sadd.s32 %s253, 1
      %p257 = scmp.eq.s32.totalorder %s30, 1
      %p258 = scmp.ne.s32.totalorder %s253, %s255
      %p259 = scmp.eq.s32.totalorder %s30, 0
      %p260 = por %p258, %p259
      %p261 = scmp.ne.s32.totalorder %s253, %s255
      %p262 = scmp.eq.s32.totalorder %s35, 1
      %p263 = por %p261, %p262
      %p264 = scmp.ne.s32.totalorder %s255, %s256
      %p265 = scmp.eq.s32.totalorder %s35, 0
      %p266 = por %p264, %p265
      %p267 = scmp.ne.s32.totalorder %s255, %s256
      %p268 = scmp.eq.s32.totalorder %s36, 1
      %p269 = por %p267, %p268
      %p271 = scmp.ne.s32.totalorder %s256, %s270
      %p272 = scmp.eq.s32.totalorder %s36, 0
      %p273 = por %p271, %p272
      %s275 = sadd.s32 %s274, 1
      %p278 = scmp.eq.s32.totalorder %s30, 1
      %p279 = scmp.ne.s32.totalorder %s274, %s276
      %p280 = scmp.eq.s32.totalorder %s30, 0
      %p281 = por %p279, %p280
      %p282 = scmp.ne.s32.totalorder %s274, %s276
      %p283 = scmp.eq.s32.totalorder %s35, 1
      %p284 = por %p282, %p283
      %p285 = scmp.ne.s32.totalorder %s276, %s277
      %p286 = scmp.eq.s32.totalorder %s35, 0
      %p287 = por %p285, %p286
      %p288 = scmp.ne.s32.totalorder %s276, %s277
      %p289 = scmp.eq.s32.totalorder %s36, 1
      %p290 = por %p288, %p289
      %p292 = scmp.ne.s32.totalorder %s277, %s291
      %p293 = scmp.eq.s32.totalorder %s36, 0
      %p294 = por %p292, %p293
      %s296 = sadd.s32 %s295, 1
      %p299 = scmp.eq.s32.totalorder %s30, 1
      %p300 = scmp.ne.s32.totalorder %s295, %s297
      %p301 = scmp.eq.s32.totalorder %s30, 0
      %p302 = por %p300, %p301
      %p303 = scmp.ne.s32.totalorder %s295, %s297
      %p304 = scmp.eq.s32.totalorder %s35, 1
      %p305 = por %p303, %p304
      %p306 = scmp.ne.s32.totalorder %s297, %s298
      %p307 = scmp.eq.s32.totalorder %s35, 0
      %p308 = por %p306, %p307
      %p309 = scmp.ne.s32.totalorder %s297, %s298
      %p310 = scmp.eq.s32.totalorder %s36, 1
      %p311 = por %p309, %p310
      %p313 = scmp.ne.s32.totalorder %s298, %s312
      %p314 = scmp.eq.s32.totalorder %s36, 0
      %p315 = por %p313, %p314
      %s317 = sadd.s32 %s316, 1
      %p320 = scmp.eq.s32.totalorder %s30, 1
      %p321 = scmp.ne.s32.totalorder %s316, %s318
      %p322 = scmp.eq.s32.totalorder %s30, 0
      %p323 = por %p321, %p322
      %p324 = scmp.ne.s32.totalorder %s316, %s318
      %p325 = scmp.eq.s32.totalorder %s35, 1
      %p326 = por %p324, %p325
      %p327 = scmp.ne.s32.totalorder %s318, %s319
      %p328 = scmp.eq.s32.totalorder %s35, 0
      %p329 = por %p327, %p328
      %p330 = scmp.ne.s32.totalorder %s318, %s319
      %p331 = scmp.eq.s32.totalorder %s36, 1
      %p332 = por %p330, %p331
      %p334 = scmp.ne.s32.totalorder %s319, %s333
      %p335 = scmp.eq.s32.totalorder %s36, 0
      %p336 = por %p334, %p335
      %s338 = sadd.s32 %s337, 1
      %p341 = scmp.eq.s32.totalorder %s30, 1
      %p342 = scmp.ne.s32.totalorder %s337, %s339
      %p343 = scmp.eq.s32.totalorder %s30, 0
      %p344 = por %p342, %p343
      %p345 = scmp.ne.s32.totalorder %s337, %s339
      %p346 = scmp.eq.s32.totalorder %s35, 1
      %p347 = por %p345, %p346
      %p348 = scmp.ne.s32.totalorder %s339, %s340
      %p349 = scmp.eq.s32.totalorder %s35, 0
      %p350 = por %p348, %p349
      %p351 = scmp.ne.s32.totalorder %s339, %s340
      %p352 = scmp.eq.s32.totalorder %s36, 1
      %p353 = por %p351, %p352
      %p355 = scmp.ne.s32.totalorder %s340, %s354
      %p356 = scmp.eq.s32.totalorder %s36, 0
      %p357 = por %p355, %p356
      %s359 = sadd.s32 %s358, 1
      %p362 = scmp.eq.s32.totalorder %s30, 1
      %p363 = scmp.ne.s32.totalorder %s358, %s360
      %p364 = scmp.eq.s32.totalorder %s30, 0
      %p365 = por %p363, %p364
      %p366 = scmp.ne.s32.totalorder %s358, %s360
      %p367 = scmp.eq.s32.totalorder %s35, 1
      %p368 = por %p366, %p367
      %p369 = scmp.ne.s32.totalorder %s360, %s361
      %p370 = scmp.eq.s32.totalorder %s35, 0
      %p371 = por %p369, %p370
      %p372 = scmp.ne.s32.totalorder %s360, %s361
      %p373 = scmp.eq.s32.totalorder %s36, 1
      %p374 = por %p372, %p373
      %p376 = scmp.ne.s32.totalorder %s361, %s375
      %p377 = scmp.eq.s32.totalorder %s36, 0
      %p378 = por %p376, %p377
      %s380 = sadd.s32 %s379, 1
      %p383 = scmp.eq.s32.totalorder %s30, 1
      %p384 = scmp.ne.s32.totalorder %s379, %s381
      %p385 = scmp.eq.s32.totalorder %s30, 0
      %p386 = por %p384, %p385
      %p387 = scmp.ne.s32.totalorder %s379, %s381
      %p388 = scmp.eq.s32.totalorder %s35, 1
      %p389 = por %p387, %p388
      %p390 = scmp.ne.s32.totalorder %s381, %s382
      %p391 = scmp.eq.s32.totalorder %s35, 0
      %p392 = por %p390, %p391
      %p393 = scmp.ne.s32.totalorder %s381, %s382
      %p394 = scmp.eq.s32.totalorder %s36, 1
      %p395 = por %p393, %p394
      %p397 = scmp.ne.s32.totalorder %s382, %s396
      %p398 = scmp.eq.s32.totalorder %s36, 0
      %p399 = por %p397, %p398
      %s401 = sadd.s32 %s400, 1
      %p404 = scmp.eq.s32.totalorder %s30, 1
      %p405 = scmp.ne.s32.totalorder %s400, %s402
      %p406 = scmp.eq.s32.totalorder %s30, 0
      %p407 = por %p405, %p406
      %p408 = scmp.ne.s32.totalorder %s400, %s402
      %p409 = scmp.eq.s32.totalorder %s35, 1
      %p410 = por %p408, %p409
      %p411 = scmp.ne.s32.totalorder %s402, %s403
      %p412 = scmp.eq.s32.totalorder %s35, 0
      %p413 = por %p411, %p412
      %p414 = scmp.ne.s32.totalorder %s402, %s403
      %p415 = scmp.eq.s32.totalorder %s36, 1
      %p416 = por %p414, %p415
      %p418 = scmp.ne.s32.totalorder %s403, %s417
      %p419 = scmp.eq.s32.totalorder %s36, 0
      %p420 = por %p418, %p419
      %s421 = ssub.s32 %s30, %s37
      %p422 = scmp.eq.s32.totalorder %s421, 0
      %s424 = sadd.s32 %s423, 1
      %s425 = scalar_select %p422, %s423, %s424
      %p428 = pneg %p422
      %p429 = scmp.eq.s32.totalorder %s30, 1
      %p430 = por %p428, %p429
      %p431 = scmp.ne.s32.totalorder %s423, %s426
      %p432 = scmp.eq.s32.totalorder %s30, 0
      %p433 = por %p431, %p432
      %p434 = scmp.ne.s32.totalorder %s423, %s426
      %p435 = scmp.eq.s32.totalorder %s35, 1
      %p436 = por %p434, %p435
      %p437 = scmp.ne.s32.totalorder %s426, %s427
      %p438 = scmp.eq.s32.totalorder %s35, 0
      %p439 = por %p437, %p438
      %p440 = scmp.ne.s32.totalorder %s426, %s427
      %p441 = scmp.eq.s32.totalorder %s36, 1
      %p442 = por %p440, %p441
      %p444 = scmp.ne.s32.totalorder %s427, %s443
      %p445 = scmp.eq.s32.totalorder %s36, 0
      %p446 = por %p444, %p445
      %p447 = scmp.le.s32.totalorder 1, %s30
      %p448 = scmp.lt.s32.totalorder %s30, 3
      %p449 = pnand %p447, %p448
      %p450 = pneg %p449
      // Predicated region
      $region9: #{tpu_custom_call.1} parent=5 // pred_check
        _
      $region10: #{tpu_custom_call.1} parent=5 // pred_check_branch
        %452 = sbr.rel (%p449) target = $region12
      $region11: #{tpu_custom_call.1} parent=5 // pred_region
        %s453 = ssub.s32 %s30, 1
        // Predicated region
        $region13: #{tpu_custom_call.1} parent=11 // pred_check
          %p454 = pneg %p77
        $region14: #{tpu_custom_call.1} parent=11 // pred_check_branch
          %456 = sbr.rel (%p454) target = $region16
        $region15: #{tpu_custom_call.1} parent=11 // pred_region
          %s458 = ssub.s32 256, 256
          %459 = vsyncadd [#allocation3], %s458
          %s460 = sshll.u32 [#allocation2], 4
          %s461 = int_to_ptr.vmem [resolvable:$true] %s460
          %466 = dma.hbm_to_vmem [thread:$0]  %s1, 256, %s461, [#allocation3], 128, 128, 8
        $region16: #{tpu_custom_call.1} parent=11 // pred_fallthru
          _
        // Predicated region
        $region17: #{tpu_custom_call.1} parent=11 // pred_check
          %p467 = pneg %p98
        $region18: #{tpu_custom_call.1} parent=11 // pred_check_branch
          %469 = sbr.rel (%p467) target = $region20
        $region19: #{tpu_custom_call.1} parent=11 // pred_region
          _
        $region20: #{tpu_custom_call.1} parent=11 // pred_fallthru
          _
        // Predicated region
        $region21: #{tpu_custom_call.1} parent=11 // pred_check
          %p470 = pneg %p119
        $region22: #{tpu_custom_call.1} parent=11 // pred_check_branch
          %472 = sbr.rel (%p470) target = $region24
        $region23: #{tpu_custom_call.1} parent=11 // pred_region
          _
        $region24: #{tpu_custom_call.1} parent=11 // pred_fallthru
          _
        // Predicated region
        $region25: #{tpu_custom_call.1} parent=11 // pred_check
          %p473 = pneg %p140
        $region26: #{tpu_custom_call.1} parent=11 // pred_check_branch
          %475 = sbr.rel (%p473) target = $region28
        $region27: #{tpu_custom_call.1} parent=11 // pred_region
          _
        $region28: #{tpu_custom_call.1} parent=11 // pred_fallthru
          _
        // Predicated region
        $region29: #{tpu_custom_call.1} parent=11 // pred_check
          %p476 = pneg %p161
        $region30: #{tpu_custom_call.1} parent=11 // pred_check_branch
          %478 = sbr.rel (%p476) target = $region32
        $region31: #{tpu_custom_call.1} parent=11 // pred_region
          _
        $region32: #{tpu_custom_call.1} parent=11 // pred_fallthru
          _
        // Predicated region
        $region33: #{tpu_custom_call.1} parent=11 // pred_check
          %p479 = pneg %p182
        $region34: #{tpu_custom_call.1} parent=11 // pred_check_branch
          %481 = sbr.rel (%p479) target = $region36
        $region35: #{tpu_custom_call.1} parent=11 // pred_region
          _
        $region36: #{tpu_custom_call.1} parent=11 // pred_fallthru
          _
        // Predicated region
        $region37: #{tpu_custom_call.1} parent=11 // pred_check
          %p482 = pneg %p203
        $region38: #{tpu_custom_call.1} parent=11 // pred_check_branch
          %484 = sbr.rel (%p482) target = $region40
        $region39: #{tpu_custom_call.1} parent=11 // pred_region
          _
        $region40: #{tpu_custom_call.1} parent=11 // pred_fallthru
          _
        // Predicated region
        $region41: #{tpu_custom_call.1} parent=11 // pred_check
          %p485 = pneg %p224
        $region42: #{tpu_custom_call.1} parent=11 // pred_check_branch
          %487 = sbr.rel (%p485) target = $region44
        $region43: #{tpu_custom_call.1} parent=11 // pred_region
          _
        $region44: #{tpu_custom_call.1} parent=11 // pred_fallthru
          _
        // Predicated region
        $region45: #{tpu_custom_call.1} parent=11 // pred_check
          %p488 = pneg %p245
        $region46: #{tpu_custom_call.1} parent=11 // pred_check_branch
          %490 = sbr.rel (%p488) target = $region48
        $region47: #{tpu_custom_call.1} parent=11 // pred_region
          %s492 = ssub.s32 16, 16
          %493 = vsyncadd [#allocation6], %s492
          %s495 = sshll.u32 [#allocation5], 4
          %s496 = int_to_ptr.vmem [resolvable:$true] %s495
          %498 = dma.hbm_to_vmem [thread:$0]  %s9, 16, %s496, [#allocation6]
        $region48: #{tpu_custom_call.1} parent=11 // pred_fallthru
          _
        // Predicated region
        $region49: #{tpu_custom_call.1} parent=11 // pred_check
          %p499 = pneg %p266
        $region50: #{tpu_custom_call.1} parent=11 // pred_check_branch
          %501 = sbr.rel (%p499) target = $region52
        $region51: #{tpu_custom_call.1} parent=11 // pred_region
          _
        $region52: #{tpu_custom_call.1} parent=11 // pred_fallthru
          _
        // Predicated region
        $region53: #{tpu_custom_call.1} parent=11 // pred_check
          %p502 = pneg %p287
        $region54: #{tpu_custom_call.1} parent=11 // pred_check_branch
          %504 = sbr.rel (%p502) target = $region56
        $region55: #{tpu_custom_call.1} parent=11 // pred_region
          %s506 = ssub.s32 16, 16
          %507 = vsyncadd [#allocation6], %s506
          %s509 = sshll.u32 [#allocation7], 4
          %s510 = int_to_ptr.vmem [resolvable:$true] %s509
          %512 = dma.hbm_to_vmem [thread:$0]  %s11, 16, %s510, [#allocation6]
        $region56: #{tpu_custom_call.1} parent=11 // pred_fallthru
          _
        // Predicated region
        $region57: #{tpu_custom_call.1} parent=11 // pred_check
          %p513 = pneg %p308
        $region58: #{tpu_custom_call.1} parent=11 // pred_check_branch
          %515 = sbr.rel (%p513) target = $region60
        $region59: #{tpu_custom_call.1} parent=11 // pred_region
          _
        $region60: #{tpu_custom_call.1} parent=11 // pred_fallthru
          _
        // Predicated region
        $region61: #{tpu_custom_call.1} parent=11 // pred_check
          %p516 = pneg %p329
        $region62: #{tpu_custom_call.1} parent=11 // pred_check_branch
          %518 = sbr.rel (%p516) target = $region64
        $region63: #{tpu_custom_call.1} parent=11 // pred_region
          %s520 = ssub.s32 16, 16
          %521 = vsyncadd [#allocation9], %s520
          %s523 = sshll.u32 [#allocation8], 4
          %s524 = int_to_ptr.vmem [resolvable:$true] %s523
          %526 = dma.hbm_to_vmem [thread:$0]  %s13, 16, %s524, [#allocation9]
        $region64: #{tpu_custom_call.1} parent=11 // pred_fallthru
          _
        // Predicated region
        $region65: #{tpu_custom_call.1} parent=11 // pred_check
          %p527 = pneg %p350
        $region66: #{tpu_custom_call.1} parent=11 // pred_check_branch
          %529 = sbr.rel (%p527) target = $region68
        $region67: #{tpu_custom_call.1} parent=11 // pred_region
          _
        $region68: #{tpu_custom_call.1} parent=11 // pred_fallthru
          _
        // Predicated region
        $region69: #{tpu_custom_call.1} parent=11 // pred_check
          %p530 = pneg %p371
        $region70: #{tpu_custom_call.1} parent=11 // pred_check_branch
          %532 = sbr.rel (%p530) target = $region72
        $region71: #{tpu_custom_call.1} parent=11 // pred_region
          _
        $region72: #{tpu_custom_call.1} parent=11 // pred_fallthru
          _
        // Predicated region
        $region73: #{tpu_custom_call.1} parent=11 // pred_check
          %p533 = pneg %p392
        $region74: #{tpu_custom_call.1} parent=11 // pred_check_branch
          %535 = sbr.rel (%p533) target = $region76
        $region75: #{tpu_custom_call.1} parent=11 // pred_region
          _
        $region76: #{tpu_custom_call.1} parent=11 // pred_fallthru
          _
        // Predicated region
        $region77: #{tpu_custom_call.1} parent=11 // pred_check
          %p536 = pneg %p413
        $region78: #{tpu_custom_call.1} parent=11 // pred_check_branch
          %538 = sbr.rel (%p536) target = $region80
        $region79: #{tpu_custom_call.1} parent=11 // pred_region
          _
        $region80: #{tpu_custom_call.1} parent=11 // pred_fallthru
          _
      $region12: #{tpu_custom_call.1} parent=5 // pred_fallthru
        _
      %p539 = scmp.lt.s32.totalorder %s30, 2
      // Predicated region
      $region81: #{tpu_custom_call.1} parent=5 // pred_check
        %p540 = pneg %p539
      $region82: #{tpu_custom_call.1} parent=5 // pred_check_branch
        %542 = sbr.rel (%p540) target = $region84
      $region83: #{tpu_custom_call.1} parent=5 // pred_region
        // Predicated region
        $region85: #{tpu_custom_call.1} parent=83 // pred_check
          %p543 = pneg %p50
        $region86: #{tpu_custom_call.1} parent=83 // pred_check_branch
          %545 = sbr.rel (%p543) target = $region88
        $region87: #{tpu_custom_call.1} parent=83 // pred_region
          %p546 = scmp.lt.s32.totalorder %s30, 1
          %s547 = scalar_select %p546, %s30, 1
          %s548 = smul.addr %s547, 8
          %s549 = scalar_lea.vmem %s0, %s548
        $region88: #{tpu_custom_call.1} parent=83 // pred_fallthru
          _
      $region84: #{tpu_custom_call.1} parent=5 // pred_fallthru
        _
      %p550 = scmp.le.s32.totalorder 1, %s30
      %p551 = scmp.lt.s32.totalorder %s30, 3
      %p552 = pnand %p550, %p551
      %p553 = pneg %p552
      // Predicated region
      $region89: #{tpu_custom_call.1} parent=5 // pred_check
        _
      $region90: #{tpu_custom_call.1} parent=5 // pred_check_branch
        %555 = sbr.rel (%p552) target = $region92
      $region91: #{tpu_custom_call.1} parent=5 // pred_region
        %s556 = ssub.s32 %s30, 1
        // Predicated region
        $region93: #{tpu_custom_call.1} parent=91 // pred_check
          %p557 = pneg %p77
        $region94: #{tpu_custom_call.1} parent=91 // pred_check_branch
          %559 = sbr.rel (%p557) target = $region96
        $region95: #{tpu_custom_call.1} parent=91 // pred_region
          %560 = dma.done [#allocation3], 256
        $region96: #{tpu_custom_call.1} parent=91 // pred_fallthru
          _
        // Predicated region
        $region97: #{tpu_custom_call.1} parent=91 // pred_check
          %p561 = pneg %p245
        $region98: #{tpu_custom_call.1} parent=91 // pred_check_branch
          %563 = sbr.rel (%p561) target = $region100
        $region99: #{tpu_custom_call.1} parent=91 // pred_region
          %564 = dma.done [#allocation6], 16
        $region100: #{tpu_custom_call.1} parent=91 // pred_fallthru
          _
        // Predicated region
        $region101: #{tpu_custom_call.1} parent=91 // pred_check
          %p565 = pneg %p287
        $region102: #{tpu_custom_call.1} parent=91 // pred_check_branch
          %567 = sbr.rel (%p565) target = $region104
        $region103: #{tpu_custom_call.1} parent=91 // pred_region
          %568 = dma.done [#allocation6], 16
        $region104: #{tpu_custom_call.1} parent=91 // pred_fallthru
          _
        // Predicated region
        $region105: #{tpu_custom_call.1} parent=91 // pred_check
          %p569 = pneg %p329
        $region106: #{tpu_custom_call.1} parent=91 // pred_check_branch
          %571 = sbr.rel (%p569) target = $region108
        $region107: #{tpu_custom_call.1} parent=91 // pred_region
          %572 = dma.done [#allocation9], 16
        $region108: #{tpu_custom_call.1} parent=91 // pred_fallthru
          _
        %p573 = scmp.lt.s32.totalorder %s35, 1
        %s574 = scalar_select %p573, %s35, 1
        %s575 = smul.addr %s574, 8
        %s576 = scalar_lea.vmem %s0, %s575
        %p577 = pneg %p56
        %p578 = pneg %p53
        %p579 = pneg %p77
        %p580 = pneg %p74
        %p581 = pneg %p98
        %p582 = pneg %p95
        %p583 = pneg %p119
        %p584 = pneg %p116
        %p585 = pneg %p140
        %p586 = pneg %p137
        %p587 = pneg %p161
        %p588 = pneg %p158
        %p589 = pneg %p182
        %p590 = pneg %p179
        %p591 = pneg %p203
        %p592 = pneg %p200
        %p593 = pneg %p224
        %p594 = pneg %p221
        %p595 = pneg %p245
        %p596 = pneg %p242
        %p597 = pneg %p266
        %p598 = pneg %p263
        %p599 = pneg %p287
        %p600 = pneg %p284
        %p601 = pneg %p308
        %p602 = pneg %p305
        %p603 = pneg %p329
        %p604 = pneg %p326
        %p605 = pneg %p350
        %p606 = pneg %p347
        %p607 = pneg %p371
        %p608 = pneg %p368
        %p609 = pneg %p392
        %p610 = pneg %p389
        %p611 = pneg %p413
        %p612 = pneg %p410
        %p613 = pneg %p439
        %p614 = pneg %p436
        %s615 = sand.u32 %s426, 1
        %s616 = scalar_lea.sflag [#allocation4], %s615
        %s617 = sand.u32 %s426, 1
        %s618 = smul.addr %s617, 8
        %s619 = scalar_lea.vmem [#allocation10], %s618
        %p620 = scmp.lt.s32.totalorder %s35, 1
        %s621 = scalar_select %p620, %s35, 1
        %s622 = smul.addr %s621, 8
        %s623 = scalar_lea.vmem %s0, %s622
        %v624 = vld [vmem:[%s623] sm:$0xff]
        %v625 = vld [vmem:[%s2] sm:$0x1]
        %v627 = vlaneseq
        %v628 = vshrl.u32 %v627, 7
        %v629 = vsub.s32 0, %v628
        %v630 = vrot.slane %v625, %v629
        %v632 = vmul.f32 %v624, %v630
        %v633 = vld [vmem:[%s3] sm:$0x1]
        %v635 = vlaneseq
        %v636 = vshrl.u32 %v635, 7
        %v637 = vsub.s32 0, %v636
        %v638 = vrot.slane %v633, %v637
        %v640 = vadd.f32 %v632, %v638
        %v641 = vld [vmem:[#allocation2] sm:$0xff]
        %v642 = vld [vmem:[#allocation2 + $0x8] sm:$0xff]
        %v643 = vld [vmem:[%s4] sm:$0x1]
        %v645 = vlaneseq
        %v646 = vshrl.u32 %v645, 7
        %v647 = vsub.s32 0, %v646
        %v648 = vrot.slane %v643, %v647
        %v650 = vmul.f32 %v641, %v648
        %v651 = vmul.f32 %v642, %v648
        %v652 = vld [vmem:[%s5] sm:$0x1]
        %v654 = vlaneseq
        %v655 = vshrl.u32 %v654, 7
        %v656 = vsub.s32 0, %v655
        %v657 = vrot.slane %v652, %v656
        %v659 = vadd.f32 %v650, %v657
        %v660 = vadd.f32 %v651, %v657
        %v661 = vld [vmem:[%s6] sm:$0xff]
        %v662 = vld [vmem:[%s6 + $0x8] sm:$0xff]
        %v663 = vld [vmem:[%s6 + $0x10] sm:$0xff]
        %v664 = vld [vmem:[%s6 + $0x18] sm:$0xff]
        %v665 = vld [vmem:[%s6 + $0x20] sm:$0xff]
        %v666 = vld [vmem:[%s6 + $0x28] sm:$0xff]
        %v667 = vld [vmem:[%s6 + $0x30] sm:$0xff]
        %v668 = vld [vmem:[%s6 + $0x38] sm:$0xff]
        %v669 = vld [vmem:[%s7] sm:$0x1]
        %v671 = vlaneseq
        %v672 = vshrl.u32 %v671, 7
        %v673 = vsub.s32 0, %v672
        %v674 = vrot.slane %v669, %v673
        %vm676 = vcmask 523264
        %v678 = vsel %vm676, %v640, 0
        %680 = vmatprep.subr.mxu0 0.0
        %681 = vmatpush1.msra.mxu0 %v661
        %682 = vmatprep.subr.mxu0 0.0
        %683 = vmatpush1.msra.mxu0 %v662
        %684 = vmatprep.subr.mxu0 0.0
        %685 = vmatpush1.msra.mxu0 %v663
        %686 = vmatprep.subr.mxu0 0.0
        %687 = vmatpush1.msra.mxu0 %v664
        %688 = vmatprep.subr.mxu0 0.0
        %689 = vmatpush1.msra.mxu0 %v665
        %690 = vmatprep.subr.mxu0 0.0
        %691 = vmatpush1.msra.mxu0 %v666
        %692 = vmatprep.subr.mxu0 0.0
        %693 = vmatpush1.msra.mxu0 %v667
        %694 = vmatprep.subr.mxu0 0.0
        %695 = vmatpush1.msra.mxu0 %v668
        %696 = vmatprep.subr.mxu0 0.0
        %697 = vmatpush1.msra.mxu0 0.0
        %698 = vmatprep.subr.mxu0 0.0
        %699 = vmatpush1.msra.mxu0 0.0
        %700 = vmatprep.subr.mxu0 0.0
        %701 = vmatpush1.msra.mxu0 0.0
        %702 = vmatprep.subr.mxu0 0.0
        %703 = vmatpush1.msra.mxu0 0.0
        %704 = vmatprep.subr.mxu0 0.0
        %705 = vmatpush1.msra.mxu0 0.0
        %706 = vmatprep.subr.mxu0 0.0
        %707 = vmatpush1.msra.mxu0 0.0
        %708 = vmatprep.subr.mxu0 0.0
        %709 = vmatpush1.msra.mxu0 0.0
        %710 = vmatprep.subr.mxu0 0.0
        %711 = vmatpush1.msra.mxu0 0.0
        %712 = vmatprep.subr.mxu0 0.0
        %713 = vmatpush1.msra.mxu0 0.0
        %714 = vmatprep.subr.mxu0 0.0
        %715 = vmatpush1.msra.mxu0 0.0
        %716 = vmatprep.subr.mxu0 0.0
        %717 = vmatpush1.msra.mxu0 0.0
        %718 = vmatprep.subr.mxu0 0.0
        %719 = vmatpush1.msra.mxu0 0.0
        %720 = vmatprep.subr.mxu0 0.0
        %721 = vmatpush1.msra.mxu0 0.0
        %722 = vmatprep.subr.mxu0 0.0
        %723 = vmatpush1.msra.mxu0 0.0
        %724 = vmatprep.subr.mxu0 0.0
        %725 = vmatpush1.msra.mxu0 0.0
        %726 = vmatprep.subr.mxu0 0.0
        %727 = vmatpush1.msra.mxu0 0.0
        %728 = vmatprep.subr.mxu0 0.0
        %729 = vmatpush1.msra.mxu0 0.0
        %730 = vmatprep.subr.mxu0 0.0
        %731 = vmatpush1.msra.mxu0 0.0
        %732 = vmatprep.subr.mxu0 0.0
        %733 = vmatpush1.msra.mxu0 0.0
        %734 = vmatprep.subr.mxu0 0.0
        %735 = vmatpush1.msra.mxu0 0.0
        %736 = vmatprep.subr.mxu0 0.0
        %737 = vmatpush1.msra.mxu0 0.0
        %738 = vmatprep.subr.mxu0 0.0
        %739 = vmatpush1.msra.mxu0 0.0
        %740 = vmatprep.subr.mxu0 0.0
        %741 = vmatpush1.msra.mxu0 0.0
        %742 = vmatprep.subr.mxu0 0.0
        %743 = vmatpush1.msra.mxu0 0.0
        %744 = vmatprep.mubr.f32.mxu0 0.0
        %745 = vmatmul.mubr.f32.gmra.mrb[0].mxu0 %v678
        %v746 = vpop.f32.mrb[0].mxu0
        %v747 = vadd.f32 %v674, %v746
        %v748 = vpop.f32.mrb[0].mxu0
        %749 = vdwg.mxu0
        %v750 = vld [vmem:[%s8] sm:$0xff]
        %v751 = vld [vmem:[%s8 + $0x8] sm:$0xff]
        %v752 = vld [vmem:[%s8 + $0x10] sm:$0xff]
        %v753 = vld [vmem:[%s8 + $0x18] sm:$0xff]
        %v754 = vld [vmem:[%s8 + $0x20] sm:$0xff]
        %v755 = vld [vmem:[%s8 + $0x28] sm:$0xff]
        %v756 = vld [vmem:[%s8 + $0x30] sm:$0xff]
        %v757 = vld [vmem:[%s8 + $0x38] sm:$0xff]
        %v758 = vld [vmem:[#allocation5] sm:$0x1]
        %v760 = vlaneseq
        %v761 = vshrl.u32 %v760, 7
        %v762 = vsub.s32 0, %v761
        %v763 = vrot.slane %v758, %v762
        %v766 = vsel %vm676, %v659, 0
        %v769 = vsel %vm676, %v660, 0
        %771 = vmatprep.subr.mxu0 0.0
        %772 = vmatpush1.msra.mxu0 %v750
        %773 = vmatprep.subr.mxu0 0.0
        %774 = vmatpush1.msra.mxu0 %v751
        %775 = vmatprep.subr.mxu0 0.0
        %776 = vmatpush1.msra.mxu0 %v752
        %777 = vmatprep.subr.mxu0 0.0
        %778 = vmatpush1.msra.mxu0 %v753
        %779 = vmatprep.subr.mxu0 0.0
        %780 = vmatpush1.msra.mxu0 %v754
        %781 = vmatprep.subr.mxu0 0.0
        %782 = vmatpush1.msra.mxu0 %v755
        %783 = vmatprep.subr.mxu0 0.0
        %784 = vmatpush1.msra.mxu0 %v756
        %785 = vmatprep.subr.mxu0 0.0
        %786 = vmatpush1.msra.mxu0 %v757
        %787 = vmatprep.subr.mxu0 0.0
        %788 = vmatpush1.msra.mxu0 0.0
        %789 = vmatprep.subr.mxu0 0.0
        %790 = vmatpush1.msra.mxu0 0.0
        %791 = vmatprep.subr.mxu0 0.0
        %792 = vmatpush1.msra.mxu0 0.0
        %793 = vmatprep.subr.mxu0 0.0
        %794 = vmatpush1.msra.mxu0 0.0
        %795 = vmatprep.subr.mxu0 0.0
        %796 = vmatpush1.msra.mxu0 0.0
        %797 = vmatprep.subr.mxu0 0.0
        %798 = vmatpush1.msra.mxu0 0.0
        %799 = vmatprep.subr.mxu0 0.0
        %800 = vmatpush1.msra.mxu0 0.0
        %801 = vmatprep.subr.mxu0 0.0
        %802 = vmatpush1.msra.mxu0 0.0
        %803 = vmatprep.subr.mxu0 0.0
        %804 = vmatpush1.msra.mxu0 0.0
        %805 = vmatprep.subr.mxu0 0.0
        %806 = vmatpush1.msra.mxu0 0.0
        %807 = vmatprep.subr.mxu0 0.0
        %808 = vmatpush1.msra.mxu0 0.0
        %809 = vmatprep.subr.mxu0 0.0
        %810 = vmatpush1.msra.mxu0 0.0
        %811 = vmatprep.subr.mxu0 0.0
        %812 = vmatpush1.msra.mxu0 0.0
        %813 = vmatprep.subr.mxu0 0.0
        %814 = vmatpush1.msra.mxu0 0.0
        %815 = vmatprep.subr.mxu0 0.0
        %816 = vmatpush1.msra.mxu0 0.0
        %817 = vmatprep.subr.mxu0 0.0
        %818 = vmatpush1.msra.mxu0 0.0
        %819 = vmatprep.subr.mxu0 0.0
        %820 = vmatpush1.msra.mxu0 0.0
        %821 = vmatprep.subr.mxu0 0.0
        %822 = vmatpush1.msra.mxu0 0.0
        %823 = vmatprep.subr.mxu0 0.0
        %824 = vmatpush1.msra.mxu0 0.0
        %825 = vmatprep.subr.mxu0 0.0
        %826 = vmatpush1.msra.mxu0 0.0
        %827 = vmatprep.subr.mxu0 0.0
        %828 = vmatpush1.msra.mxu0 0.0
        %829 = vmatprep.subr.mxu0 0.0
        %830 = vmatpush1.msra.mxu0 0.0
        %831 = vmatprep.subr.mxu0 0.0
        %832 = vmatpush1.msra.mxu0 0.0
        %833 = vmatprep.subr.mxu0 0.0
        %834 = vmatpush1.msra.mxu0 0.0
        %835 = vmatprep.mubr.f32.mxu0 0.0
        %836 = vmatmul.mubr.f32.gmra.mrb[0].mxu0 %v766
        %v837 = vpop.f32.mrb[0].mxu0
        %v838 = vadd.f32 %v763, %v837
        %v839 = vpop.f32.mrb[0].mxu0
        %840 = vmatprep.mubr.f32.mxu0 0.0
        %841 = vmatmul.mubr.f32.gmra.mrb[0].mxu0 %v769
        %v842 = vpop.f32.mrb[0].mxu0
        %v843 = vadd.f32 %v763, %v842
        %v844 = vpop.f32.mrb[0].mxu0
        %845 = vdwg.mxu0
        %v847 = vsel %vm676, %v747, 0
        %v850 = vsel %vm676, %v838, 0
        %v853 = vsel %vm676, %v843, 0
        %855 = vmatprep.subr.mxu0 0.0
        %856 = vmatpush1.xpose.msra.mxu0 %v850
        %857 = vmatprep.subr.mxu0 0.0
        %858 = vmatpush1.xpose.msra.mxu0 %v853
        %859 = vmatprep.subr.mxu0 0.0
        %860 = vmatpush1.xpose.msra.mxu0 0.0
        %861 = vmatprep.subr.mxu0 0.0
        %862 = vmatpush1.xpose.msra.mxu0 0.0
        %863 = vmatprep.subr.mxu0 0.0
        %864 = vmatpush1.xpose.msra.mxu0 0.0
        %865 = vmatprep.subr.mxu0 0.0
        %866 = vmatpush1.xpose.msra.mxu0 0.0
        %867 = vmatprep.subr.mxu0 0.0
        %868 = vmatpush1.xpose.msra.mxu0 0.0
        %869 = vmatprep.subr.mxu0 0.0
        %870 = vmatpush1.xpose.msra.mxu0 0.0
        %871 = vmatprep.subr.mxu0 0.0
        %872 = vmatpush1.xpose.msra.mxu0 0.0
        %873 = vmatprep.subr.mxu0 0.0
        %874 = vmatpush1.xpose.msra.mxu0 0.0
        %875 = vmatprep.subr.mxu0 0.0
        %876 = vmatpush1.xpose.msra.mxu0 0.0
        %877 = vmatprep.subr.mxu0 0.0
        %878 = vmatpush1.xpose.msra.mxu0 0.0
        %879 = vmatprep.subr.mxu0 0.0
        %880 = vmatpush1.xpose.msra.mxu0 0.0
        %881 = vmatprep.subr.mxu0 0.0
        %882 = vmatpush1.xpose.msra.mxu0 0.0
        %883 = vmatprep.subr.mxu0 0.0
        %884 = vmatpush1.xpose.msra.mxu0 0.0
        %885 = vmatprep.subr.mxu0 0.0
        %886 = vmatpush1.xpose.msra.mxu0 0.0
        %887 = vmatprep.subr.mxu0 0.0
        %888 = vmatpush1.xpose.msra.mxu0 0.0
        %889 = vmatprep.subr.mxu0 0.0
        %890 = vmatpush1.xpose.msra.mxu0 0.0
        %891 = vmatprep.subr.mxu0 0.0
        %892 = vmatpush1.xpose.msra.mxu0 0.0
        %893 = vmatprep.subr.mxu0 0.0
        %894 = vmatpush1.xpose.msra.mxu0 0.0
        %895 = vmatprep.subr.mxu0 0.0
        %896 = vmatpush1.xpose.msra.mxu0 0.0
        %897 = vmatprep.subr.mxu0 0.0
        %898 = vmatpush1.xpose.msra.mxu0 0.0
        %899 = vmatprep.subr.mxu0 0.0
        %900 = vmatpush1.xpose.msra.mxu0 0.0
        %901 = vmatprep.subr.mxu0 0.0
        %902 = vmatpush1.xpose.msra.mxu0 0.0
        %903 = vmatprep.subr.mxu0 0.0
        %904 = vmatpush1.xpose.msra.mxu0 0.0
        %905 = vmatprep.subr.mxu0 0.0
        %906 = vmatpush1.xpose.msra.mxu0 0.0
        %907 = vmatprep.subr.mxu0 0.0
        %908 = vmatpush1.xpose.msra.mxu0 0.0
        %909 = vmatprep.subr.mxu0 0.0
        %910 = vmatpush1.xpose.msra.mxu0 0.0
        %911 = vmatprep.subr.mxu0 0.0
        %912 = vmatpush1.xpose.msra.mxu0 0.0
        %913 = vmatprep.subr.mxu0 0.0
        %914 = vmatpush1.xpose.msra.mxu0 0.0
        %915 = vmatprep.subr.mxu0 0.0
        %916 = vmatpush1.xpose.msra.mxu0 0.0
        %917 = vmatprep.subr.mxu0 0.0
        %918 = vmatpush1.xpose.msra.mxu0 0.0
        %919 = vmatprep.mubr.f32.mxu0 0.0
        %920 = vmatmul.mubr.f32.gmra.mrb[0].mxu0 %v847
        %v921 = vpop.f32.mrb[0].mxu0
        %v922 = vadd.f32 0.0, %v921
        %v923 = vpop.f32.mrb[0].mxu0
        %924 = vdwg.mxu0
        %v925 = vmul.f32 %v922, 0.125
        %vm926 = vcmask 130048
        %v927 = vsel %vm926, %v925, -inf
        %928 = vmax.xlane.f32.xlu0 %v927
        %v929 = vpop.xlane.xlu0 %928
        %v930 = vsub.f32 %v925, %v929
        %v931 = vmul.f32 %v930, 1.442695
        %v932 = vpow.pop %v931
        %v933 = vsel %vm926, %v932, 0.0
        %934 = vadd.xlane.f32.xlu0 %v933
        %v935 = vpop.xlane.xlu0 %934
        %v936 = vrcp.pop %v935
        %v937 = vmul.f32 %v932, %v936
        %938 = vrot.lane.b32.xlu0 %v838, 64
        %v939 = vpop.permute.xlu0 %938
        %940 = vrot.lane.b32.xlu0 %v843, 64
        %v941 = vpop.permute.xlu0 %940
        %v945 = vsel %vm926, %v937, 0
        %947 = vmatprep.subr.mxu0 0.0
        %948 = vmatpush1.msra.mxu0 %v939
        %949 = vmatprep.subr.mxu0 0.0
        %950 = vmatpush1.msra.mxu0 %v941
        %951 = vmatprep.subr.mxu0 0.0
        %952 = vmatpush1.msra.mxu0 0.0
        %953 = vmatprep.subr.mxu0 0.0
        %954 = vmatpush1.msra.mxu0 0.0
        %955 = vmatprep.subr.mxu0 0.0
        %956 = vmatpush1.msra.mxu0 0.0
        %957 = vmatprep.subr.mxu0 0.0
        %958 = vmatpush1.msra.mxu0 0.0
        %959 = vmatprep.subr.mxu0 0.0
        %960 = vmatpush1.msra.mxu0 0.0
        %961 = vmatprep.subr.mxu0 0.0
        %962 = vmatpush1.msra.mxu0 0.0
        %963 = vmatprep.subr.mxu0 0.0
        %964 = vmatpush1.msra.mxu0 0.0
        %965 = vmatprep.subr.mxu0 0.0
        %966 = vmatpush1.msra.mxu0 0.0
        %967 = vmatprep.subr.mxu0 0.0
        %968 = vmatpush1.msra.mxu0 0.0
        %969 = vmatprep.subr.mxu0 0.0
        %970 = vmatpush1.msra.mxu0 0.0
        %971 = vmatprep.subr.mxu0 0.0
        %972 = vmatpush1.msra.mxu0 0.0
        %973 = vmatprep.subr.mxu0 0.0
        %974 = vmatpush1.msra.mxu0 0.0
        %975 = vmatprep.subr.mxu0 0.0
        %976 = vmatpush1.msra.mxu0 0.0
        %977 = vmatprep.subr.mxu0 0.0
        %978 = vmatpush1.msra.mxu0 0.0
        %979 = vmatprep.subr.mxu0 0.0
        %980 = vmatpush1.msra.mxu0 0.0
        %981 = vmatprep.subr.mxu0 0.0
        %982 = vmatpush1.msra.mxu0 0.0
        %983 = vmatprep.subr.mxu0 0.0
        %984 = vmatpush1.msra.mxu0 0.0
        %985 = vmatprep.subr.mxu0 0.0
        %986 = vmatpush1.msra.mxu0 0.0
        %987 = vmatprep.subr.mxu0 0.0
        %988 = vmatpush1.msra.mxu0 0.0
        %989 = vmatprep.subr.mxu0 0.0
        %990 = vmatpush1.msra.mxu0 0.0
        %991 = vmatprep.subr.mxu0 0.0
        %992 = vmatpush1.msra.mxu0 0.0
        %993 = vmatprep.subr.mxu0 0.0
        %994 = vmatpush1.msra.mxu0 0.0
        %995 = vmatprep.subr.mxu0 0.0
        %996 = vmatpush1.msra.mxu0 0.0
        %997 = vmatprep.subr.mxu0 0.0
        %998 = vmatpush1.msra.mxu0 0.0
        %999 = vmatprep.subr.mxu0 0.0
        %1000 = vmatpush1.msra.mxu0 0.0
        %1001 = vmatprep.subr.mxu0 0.0
        %1002 = vmatpush1.msra.mxu0 0.0
        %1003 = vmatprep.subr.mxu0 0.0
        %1004 = vmatpush1.msra.mxu0 0.0
        %1005 = vmatprep.subr.mxu0 0.0
        %1006 = vmatpush1.msra.mxu0 0.0
        %1007 = vmatprep.subr.mxu0 0.0
        %1008 = vmatpush1.msra.mxu0 0.0
        %1009 = vmatprep.subr.mxu0 0.0
        %1010 = vmatpush1.msra.mxu0 0.0
        %1011 = vmatprep.mubr.f32.mxu0 0.0
        %1012 = vmatmul.mubr.f32.gmra.mrb[0].mxu0 %v945
        %v1013 = vpop.f32.mrb[0].mxu0
        %v1014 = vadd.f32 0.0, %v1013
        %v1015 = vpop.f32.mrb[0].mxu0
        %1016 = vdwg.mxu0
        %v1017 = vld [vmem:[%s10] sm:$0xff]
        %v1018 = vld [vmem:[%s10 + $0x8] sm:$0xff]
        %v1019 = vld [vmem:[%s10 + $0x10] sm:$0xff]
        %v1020 = vld [vmem:[%s10 + $0x18] sm:$0xff]
        %v1021 = vld [vmem:[%s10 + $0x20] sm:$0xff]
        %v1022 = vld [vmem:[%s10 + $0x28] sm:$0xff]
        %v1023 = vld [vmem:[%s10 + $0x30] sm:$0xff]
        %v1024 = vld [vmem:[%s10 + $0x38] sm:$0xff]
        %v1025 = vld [vmem:[#allocation7] sm:$0x1]
        %v1027 = vlaneseq
        %v1028 = vshrl.u32 %v1027, 7
        %v1029 = vsub.s32 0, %v1028
        %v1030 = vrot.slane %v1025, %v1029
        %v1033 = vsel %vm676, %v1014, 0
        %1035 = vmatprep.subr.mxu0 0.0
        %1036 = vmatpush1.msra.mxu0 %v1017
        %1037 = vmatprep.subr.mxu0 0.0
        %1038 = vmatpush1.msra.mxu0 %v1018
        %1039 = vmatprep.subr.mxu0 0.0
        %1040 = vmatpush1.msra.mxu0 %v1019
        %1041 = vmatprep.subr.mxu0 0.0
        %1042 = vmatpush1.msra.mxu0 %v1020
        %1043 = vmatprep.subr.mxu0 0.0
        %1044 = vmatpush1.msra.mxu0 %v1021
        %1045 = vmatprep.subr.mxu0 0.0
        %1046 = vmatpush1.msra.mxu0 %v1022
        %1047 = vmatprep.subr.mxu0 0.0
        %1048 = vmatpush1.msra.mxu0 %v1023
        %1049 = vmatprep.subr.mxu0 0.0
        %1050 = vmatpush1.msra.mxu0 %v1024
        %1051 = vmatprep.subr.mxu0 0.0
        %1052 = vmatpush1.msra.mxu0 0.0
        %1053 = vmatprep.subr.mxu0 0.0
        %1054 = vmatpush1.msra.mxu0 0.0
        %1055 = vmatprep.subr.mxu0 0.0
        %1056 = vmatpush1.msra.mxu0 0.0
        %1057 = vmatprep.subr.mxu0 0.0
        %1058 = vmatpush1.msra.mxu0 0.0
        %1059 = vmatprep.subr.mxu0 0.0
        %1060 = vmatpush1.msra.mxu0 0.0
        %1061 = vmatprep.subr.mxu0 0.0
        %1062 = vmatpush1.msra.mxu0 0.0
        %1063 = vmatprep.subr.mxu0 0.0
        %1064 = vmatpush1.msra.mxu0 0.0
        %1065 = vmatprep.subr.mxu0 0.0
        %1066 = vmatpush1.msra.mxu0 0.0
        %1067 = vmatprep.subr.mxu0 0.0
        %1068 = vmatpush1.msra.mxu0 0.0
        %1069 = vmatprep.subr.mxu0 0.0
        %1070 = vmatpush1.msra.mxu0 0.0
        %1071 = vmatprep.subr.mxu0 0.0
        %1072 = vmatpush1.msra.mxu0 0.0
        %1073 = vmatprep.subr.mxu0 0.0
        %1074 = vmatpush1.msra.mxu0 0.0
        %1075 = vmatprep.subr.mxu0 0.0
        %1076 = vmatpush1.msra.mxu0 0.0
        %1077 = vmatprep.subr.mxu0 0.0
        %1078 = vmatpush1.msra.mxu0 0.0
        %1079 = vmatprep.subr.mxu0 0.0
        %1080 = vmatpush1.msra.mxu0 0.0
        %1081 = vmatprep.subr.mxu0 0.0
        %1082 = vmatpush1.msra.mxu0 0.0
        %1083 = vmatprep.subr.mxu0 0.0
        %1084 = vmatpush1.msra.mxu0 0.0
        %1085 = vmatprep.subr.mxu0 0.0
        %1086 = vmatpush1.msra.mxu0 0.0
        %1087 = vmatprep.subr.mxu0 0.0
        %1088 = vmatpush1.msra.mxu0 0.0
        %1089 = vmatprep.subr.mxu0 0.0
        %1090 = vmatpush1.msra.mxu0 0.0
        %1091 = vmatprep.subr.mxu0 0.0
        %1092 = vmatpush1.msra.mxu0 0.0
        %1093 = vmatprep.subr.mxu0 0.0
        %1094 = vmatpush1.msra.mxu0 0.0
        %1095 = vmatprep.subr.mxu0 0.0
        %1096 = vmatpush1.msra.mxu0 0.0
        %1097 = vmatprep.subr.mxu0 0.0
        %1098 = vmatpush1.msra.mxu0 0.0
        %1099 = vmatprep.mubr.f32.mxu0 0.0
        %1100 = vmatmul.mubr.f32.gmra.mrb[0].mxu0 %v1033
        %v1101 = vpop.f32.mrb[0].mxu0
        %v1102 = vadd.f32 %v1030, %v1101
        %v1103 = vpop.f32.mrb[0].mxu0
        %1104 = vdwg.mxu0
        %v1105 = vmax.f32 %v1102, 0.0
        %v1106 = vld [vmem:[%s12] sm:$0xff]
        %v1107 = vld [vmem:[%s12 + $0x8] sm:$0xff]
        %v1108 = vld [vmem:[%s12 + $0x10] sm:$0xff]
        %v1109 = vld [vmem:[%s12 + $0x18] sm:$0xff]
        %v1110 = vld [vmem:[%s12 + $0x20] sm:$0xff]
        %v1111 = vld [vmem:[%s12 + $0x28] sm:$0xff]
        %v1112 = vld [vmem:[%s12 + $0x30] sm:$0xff]
        %v1113 = vld [vmem:[%s12 + $0x38] sm:$0xff]
        %v1114 = vld [vmem:[%s12 + $0x40] sm:$0xff]
        %v1115 = vld [vmem:[%s12 + $0x48] sm:$0xff]
        %v1116 = vld [vmem:[%s12 + $0x50] sm:$0xff]
        %v1117 = vld [vmem:[%s12 + $0x58] sm:$0xff]
        %v1118 = vld [vmem:[%s12 + $0x60] sm:$0xff]
        %v1119 = vld [vmem:[%s12 + $0x68] sm:$0xff]
        %v1120 = vld [vmem:[%s12 + $0x70] sm:$0xff]
        %v1121 = vld [vmem:[%s12 + $0x78] sm:$0xff]
        %v1122 = vld [vmem:[#allocation8] sm:$0x1]
        %v1124 = vlaneseq
        %v1125 = vshrl.u32 %v1124, 7
        %v1126 = vsub.s32 0, %v1125
        %v1127 = vrot.slane %v1122, %v1126
        %1129 = vmatprep.subr.mxu0 0.0
        %1130 = vmatpush1.msra.mxu0 %v1106
        %1131 = vmatprep.subr.mxu0 0.0
        %1132 = vmatpush1.msra.mxu0 %v1107
        %1133 = vmatprep.subr.mxu0 0.0
        %1134 = vmatpush1.msra.mxu0 %v1108
        %1135 = vmatprep.subr.mxu0 0.0
        %1136 = vmatpush1.msra.mxu0 %v1109
        %1137 = vmatprep.subr.mxu0 0.0
        %1138 = vmatpush1.msra.mxu0 %v1110
        %1139 = vmatprep.subr.mxu0 0.0
        %1140 = vmatpush1.msra.mxu0 %v1111
        %1141 = vmatprep.subr.mxu0 0.0
        %1142 = vmatpush1.msra.mxu0 %v1112
        %1143 = vmatprep.subr.mxu0 0.0
        %1144 = vmatpush1.msra.mxu0 %v1113
        %1145 = vmatprep.subr.mxu0 0.0
        %1146 = vmatpush1.msra.mxu0 %v1114
        %1147 = vmatprep.subr.mxu0 0.0
        %1148 = vmatpush1.msra.mxu0 %v1115
        %1149 = vmatprep.subr.mxu0 0.0
        %1150 = vmatpush1.msra.mxu0 %v1116
        %1151 = vmatprep.subr.mxu0 0.0
        %1152 = vmatpush1.msra.mxu0 %v1117
        %1153 = vmatprep.subr.mxu0 0.0
        %1154 = vmatpush1.msra.mxu0 %v1118
        %1155 = vmatprep.subr.mxu0 0.0
        %1156 = vmatpush1.msra.mxu0 %v1119
        %1157 = vmatprep.subr.mxu0 0.0
        %1158 = vmatpush1.msra.mxu0 %v1120
        %1159 = vmatprep.subr.mxu0 0.0
        %1160 = vmatpush1.msra.mxu0 %v1121
        %1161 = vmatprep.subr.mxu0 0.0
        %1162 = vmatpush1.msra.mxu0 0.0
        %1163 = vmatprep.subr.mxu0 0.0
        %1164 = vmatpush1.msra.mxu0 0.0
        %1165 = vmatprep.subr.mxu0 0.0
        %1166 = vmatpush1.msra.mxu0 0.0
        %1167 = vmatprep.subr.mxu0 0.0
        %1168 = vmatpush1.msra.mxu0 0.0
        %1169 = vmatprep.subr.mxu0 0.0
        %1170 = vmatpush1.msra.mxu0 0.0
        %1171 = vmatprep.subr.mxu0 0.0
        %1172 = vmatpush1.msra.mxu0 0.0
        %1173 = vmatprep.subr.mxu0 0.0
        %1174 = vmatpush1.msra.mxu0 0.0
        %1175 = vmatprep.subr.mxu0 0.0
        %1176 = vmatpush1.msra.mxu0 0.0
        %1177 = vmatprep.subr.mxu0 0.0
        %1178 = vmatpush1.msra.mxu0 0.0
        %1179 = vmatprep.subr.mxu0 0.0
        %1180 = vmatpush1.msra.mxu0 0.0
        %1181 = vmatprep.subr.mxu0 0.0
        %1182 = vmatpush1.msra.mxu0 0.0
        %1183 = vmatprep.subr.mxu0 0.0
        %1184 = vmatpush1.msra.mxu0 0.0
        %1185 = vmatprep.subr.mxu0 0.0
        %1186 = vmatpush1.msra.mxu0 0.0
        %1187 = vmatprep.subr.mxu0 0.0
        %1188 = vmatpush1.msra.mxu0 0.0
        %1189 = vmatprep.subr.mxu0 0.0
        %1190 = vmatpush1.msra.mxu0 0.0
        %1191 = vmatprep.subr.mxu0 0.0
        %1192 = vmatpush1.msra.mxu0 0.0
        %1193 = vmatprep.mubr.f32.mxu0 0.0
        %1194 = vmatmul.mubr.f32.gmra.mrb[0].mxu0 %v1105
        %v1195 = vpop.f32.mrb[0].mxu0
        %v1196 = vadd.f32 %v1127, %v1195
        %v1197 = vpop.f32.mrb[0].mxu0
        %1198 = vdwg.mxu0
        %v1199 = vmax.f32 %v1196, 0.0
        %v1200 = vld [vmem:[%s14] sm:$0xff]
        %v1201 = vld [vmem:[%s14 + $0x8] sm:$0xff]
        %v1202 = vld [vmem:[%s14 + $0x10] sm:$0xff]
        %v1203 = vld [vmem:[%s14 + $0x18] sm:$0xff]
        %v1204 = vld [vmem:[%s14 + $0x20] sm:$0xff]
        %v1205 = vld [vmem:[%s14 + $0x28] sm:$0xff]
        %v1206 = vld [vmem:[%s14 + $0x30] sm:$0xff]
        %v1207 = vld [vmem:[%s14 + $0x38] sm:$0xff]
        %v1208 = vld [vmem:[%s15] sm:$0x1]
        %v1210 = vlaneseq
        %v1211 = vshrl.u32 %v1210, 7
        %v1212 = vsub.s32 0, %v1211
        %v1213 = vrot.slane %v1208, %v1212
        %v1216 = vsel %vm676, %v1199, 0
        %1218 = vmatprep.subr.mxu0 0.0
        %1219 = vmatpush1.msra.mxu0 %v1200
        %1220 = vmatprep.subr.mxu0 0.0
        %1221 = vmatpush1.msra.mxu0 %v1201
        %1222 = vmatprep.subr.mxu0 0.0
        %1223 = vmatpush1.msra.mxu0 %v1202
        %1224 = vmatprep.subr.mxu0 0.0
        %1225 = vmatpush1.msra.mxu0 %v1203
        %1226 = vmatprep.subr.mxu0 0.0
        %1227 = vmatpush1.msra.mxu0 %v1204
        %1228 = vmatprep.subr.mxu0 0.0
        %1229 = vmatpush1.msra.mxu0 %v1205
        %1230 = vmatprep.subr.mxu0 0.0
        %1231 = vmatpush1.msra.mxu0 %v1206
        %1232 = vmatprep.subr.mxu0 0.0
        %1233 = vmatpush1.msra.mxu0 %v1207
        %1234 = vmatprep.subr.mxu0 0.0
        %1235 = vmatpush1.msra.mxu0 0.0
        %1236 = vmatprep.subr.mxu0 0.0
        %1237 = vmatpush1.msra.mxu0 0.0
        %1238 = vmatprep.subr.mxu0 0.0
        %1239 = vmatpush1.msra.mxu0 0.0
        %1240 = vmatprep.subr.mxu0 0.0
        %1241 = vmatpush1.msra.mxu0 0.0
        %1242 = vmatprep.subr.mxu0 0.0
        %1243 = vmatpush1.msra.mxu0 0.0
        %1244 = vmatprep.subr.mxu0 0.0
        %1245 = vmatpush1.msra.mxu0 0.0
        %1246 = vmatprep.subr.mxu0 0.0
        %1247 = vmatpush1.msra.mxu0 0.0
        %1248 = vmatprep.subr.mxu0 0.0
        %1249 = vmatpush1.msra.mxu0 0.0
        %1250 = vmatprep.subr.mxu0 0.0
        %1251 = vmatpush1.msra.mxu0 0.0
        %1252 = vmatprep.subr.mxu0 0.0
        %1253 = vmatpush1.msra.mxu0 0.0
        %1254 = vmatprep.subr.mxu0 0.0
        %1255 = vmatpush1.msra.mxu0 0.0
        %1256 = vmatprep.subr.mxu0 0.0
        %1257 = vmatpush1.msra.mxu0 0.0
        %1258 = vmatprep.subr.mxu0 0.0
        %1259 = vmatpush1.msra.mxu0 0.0
        %1260 = vmatprep.subr.mxu0 0.0
        %1261 = vmatpush1.msra.mxu0 0.0
        %1262 = vmatprep.subr.mxu0 0.0
        %1263 = vmatpush1.msra.mxu0 0.0
        %1264 = vmatprep.subr.mxu0 0.0
        %1265 = vmatpush1.msra.mxu0 0.0
        %1266 = vmatprep.subr.mxu0 0.0
        %1267 = vmatpush1.msra.mxu0 0.0
        %1268 = vmatprep.subr.mxu0 0.0
        %1269 = vmatpush1.msra.mxu0 0.0
        %1270 = vmatprep.subr.mxu0 0.0
        %1271 = vmatpush1.msra.mxu0 0.0
        %1272 = vmatprep.subr.mxu0 0.0
        %1273 = vmatpush1.msra.mxu0 0.0
        %1274 = vmatprep.subr.mxu0 0.0
        %1275 = vmatpush1.msra.mxu0 0.0
        %1276 = vmatprep.subr.mxu0 0.0
        %1277 = vmatpush1.msra.mxu0 0.0
        %1278 = vmatprep.subr.mxu0 0.0
        %1279 = vmatpush1.msra.mxu0 0.0
        %1280 = vmatprep.subr.mxu0 0.0
        %1281 = vmatpush1.msra.mxu0 0.0
        %1282 = vmatprep.mubr.f32.mxu0 0.0
        %1283 = vmatmul.mubr.f32.gmra.mrb[0].mxu0 %v1216
        %v1284 = vpop.f32.mrb[0].mxu0
        %v1285 = vadd.f32 %v1213, %v1284
        %v1286 = vpop.f32.mrb[0].mxu0
        %1287 = vdwg.mxu0
        %v1288 = vmax.f32 %v1285, 0.0
        %v1289 = vld [vmem:[%s16] sm:$0xff]
        %v1290 = vld [vmem:[%s16 + $0x8] sm:$0xff]
        %v1291 = vld [vmem:[%s16 + $0x10] sm:$0xff]
        %v1292 = vld [vmem:[%s16 + $0x18] sm:$0xff]
        %v1293 = vld [vmem:[%s17] sm:$0x1]
        %v1295 = vlaneseq
        %v1296 = vshrl.u32 %v1295, 7
        %v1297 = vsub.s32 0, %v1296
        %v1298 = vrot.slane %v1293, %v1297
        %vm1300 = vcmask 261120
        %v1302 = vsel %vm1300, %v1288, 0
        %1304 = vmatprep.subr.mxu0 0.0
        %1305 = vmatpush1.msra.mxu0 %v1289
        %1306 = vmatprep.subr.mxu0 0.0
        %1307 = vmatpush1.msra.mxu0 %v1290
        %1308 = vmatprep.subr.mxu0 0.0
        %1309 = vmatpush1.msra.mxu0 %v1291
        %1310 = vmatprep.subr.mxu0 0.0
        %1311 = vmatpush1.msra.mxu0 %v1292
        %1312 = vmatprep.subr.mxu0 0.0
        %1313 = vmatpush1.msra.mxu0 0.0
        %1314 = vmatprep.subr.mxu0 0.0
        %1315 = vmatpush1.msra.mxu0 0.0
        %1316 = vmatprep.subr.mxu0 0.0
        %1317 = vmatpush1.msra.mxu0 0.0
        %1318 = vmatprep.subr.mxu0 0.0
        %1319 = vmatpush1.msra.mxu0 0.0
        %1320 = vmatprep.subr.mxu0 0.0
        %1321 = vmatpush1.msra.mxu0 0.0
        %1322 = vmatprep.subr.mxu0 0.0
        %1323 = vmatpush1.msra.mxu0 0.0
        %1324 = vmatprep.subr.mxu0 0.0
        %1325 = vmatpush1.msra.mxu0 0.0
        %1326 = vmatprep.subr.mxu0 0.0
        %1327 = vmatpush1.msra.mxu0 0.0
        %1328 = vmatprep.subr.mxu0 0.0
        %1329 = vmatpush1.msra.mxu0 0.0
        %1330 = vmatprep.subr.mxu0 0.0
        %1331 = vmatpush1.msra.mxu0 0.0
        %1332 = vmatprep.subr.mxu0 0.0
        %1333 = vmatpush1.msra.mxu0 0.0
        %1334 = vmatprep.subr.mxu0 0.0
        %1335 = vmatpush1.msra.mxu0 0.0
        %1336 = vmatprep.subr.mxu0 0.0
        %1337 = vmatpush1.msra.mxu0 0.0
        %1338 = vmatprep.subr.mxu0 0.0
        %1339 = vmatpush1.msra.mxu0 0.0
        %1340 = vmatprep.subr.mxu0 0.0
        %1341 = vmatpush1.msra.mxu0 0.0
        %1342 = vmatprep.subr.mxu0 0.0
        %1343 = vmatpush1.msra.mxu0 0.0
        %1344 = vmatprep.subr.mxu0 0.0
        %1345 = vmatpush1.msra.mxu0 0.0
        %1346 = vmatprep.subr.mxu0 0.0
        %1347 = vmatpush1.msra.mxu0 0.0
        %1348 = vmatprep.subr.mxu0 0.0
        %1349 = vmatpush1.msra.mxu0 0.0
        %1350 = vmatprep.subr.mxu0 0.0
        %1351 = vmatpush1.msra.mxu0 0.0
        %1352 = vmatprep.subr.mxu0 0.0
        %1353 = vmatpush1.msra.mxu0 0.0
        %1354 = vmatprep.subr.mxu0 0.0
        %1355 = vmatpush1.msra.mxu0 0.0
        %1356 = vmatprep.subr.mxu0 0.0
        %1357 = vmatpush1.msra.mxu0 0.0
        %1358 = vmatprep.subr.mxu0 0.0
        %1359 = vmatpush1.msra.mxu0 0.0
        %1360 = vmatprep.subr.mxu0 0.0
        %1361 = vmatpush1.msra.mxu0 0.0
        %1362 = vmatprep.subr.mxu0 0.0
        %1363 = vmatpush1.msra.mxu0 0.0
        %1364 = vmatprep.subr.mxu0 0.0
        %1365 = vmatpush1.msra.mxu0 0.0
        %1366 = vmatprep.subr.mxu0 0.0
        %1367 = vmatpush1.msra.mxu0 0.0
        %1368 = vmatprep.mubr.f32.mxu0 0.0
        %1369 = vmatmul.mubr.f32.gmra.mrb[0].mxu0 %v1302
        %v1370 = vpop.f32.mrb[0].mxu0
        %v1371 = vadd.f32 %v1298, %v1370
        %v1372 = vpop.f32.mrb[0].mxu0
        %1373 = vdwg.mxu0
        %1374 = vst [vmem:[%s619] sm:$0xff] %v1371
        %s1375 = sand.u32 %s426, 1
        %s1376 = scalar_lea.sflag [#allocation4], %s1375
        %s1377 = sand.u32 %s426, 1
        %s1378 = smul.addr %s1377, 8
        %s1379 = scalar_lea.vmem [#allocation10], %s1378
        // Predicated region
        $region109: #{tpu_custom_call.1} parent=91 // pred_check
          %p1380 = pneg %p436
        $region110: #{tpu_custom_call.1} parent=91 // pred_check_branch
          %1382 = sbr.rel (%p1380) target = $region112
        $region111: #{tpu_custom_call.1} parent=91 // pred_region
          %s1384 = ssub.s32 128, 128
          %1385 = vsyncadd %s1376, %s1384
          %s1386 = smul.addr %s35, 128
          %s1387 = scalar_lea.hbm %s18, %s1386
          %s1389 = sshll.u32 %s1379, 4
          %s1390 = int_to_ptr.vmem [resolvable:$true] %s1389
          %1392 = dma.vmem_to_hbm [thread:$0]  %s1390, 128, %s1387, %s1376
        $region112: #{tpu_custom_call.1} parent=91 // pred_fallthru
          _
      $region92: #{tpu_custom_call.1} parent=5 // pred_fallthru
        _
      %p1393 = scmp.le.s32.totalorder 2, %s30
      // Predicated region
      $region113: #{tpu_custom_call.1} parent=5 // pred_check
        %p1394 = pneg %p1393
      $region114: #{tpu_custom_call.1} parent=5 // pred_check_branch
        %1396 = sbr.rel (%p1394) target = $region116
      $region115: #{tpu_custom_call.1} parent=5 // pred_region
        %s1397 = ssub.s32 %s30, 2
        // Predicated region
        $region117: #{tpu_custom_call.1} parent=115 // pred_check
          %p1398 = pneg %p442
        $region118: #{tpu_custom_call.1} parent=115 // pred_check_branch
          %1400 = sbr.rel (%p1398) target = $region120
        $region119: #{tpu_custom_call.1} parent=115 // pred_region
          %s1401 = sand.u32 %s427, 1
          %s1402 = scalar_lea.sflag [#allocation4], %s1401
          %s1403 = sand.u32 %s427, 1
          %s1404 = smul.addr %s1403, 8
          %s1405 = scalar_lea.vmem [#allocation10], %s1404
          %1406 = dma.done %s1402, 128
        $region120: #{tpu_custom_call.1} parent=115 // pred_fallthru
          _
      $region116: #{tpu_custom_call.1} parent=5 // pred_fallthru
        _
    $region6: #{tpu_custom_call.1} parent=1 // loop_footer
      %s34 = sadd.s32 1, %s30
    $region7: #{tpu_custom_call.1} parent=1 // loop_footer_branch
      %29 = sbr.rel target = $region3
    $region8: #{tpu_custom_call.1} parent=1 // loop_exit
      _
    %1407 = vsyncpa [#allocation3], 1
    %s1408 = scalar_lea.sflag [#allocation3], 1
    %1409 = vsyncpa %s1408, 1
    %1410 = vsyncpa [#allocation6], 1
    %1411 = vsyncpa [#allocation9], 1
    %1412 = vsyncpa [#allocation4], 1
    %s1413 = scalar_lea.sflag [#allocation4], 1
    %1414 = vsyncpa %s1413, 1

</llo_original>
